<compile_context>
chip_gen: v7x
topology: tpu7x:2x2x1
jax: 0.10.0
libtpu: 0.0.40
codegen_flags: <defaults>
</compile_context>

<pallas_src>
import functools

import jax
import jax.numpy as jnp
from jax.experimental import pallas as pl
from jax.experimental.pallas import tpu as pltpu


LANE = 128        # lane width; action output padded to a multiple of this
MAX_TILE = 4096   # cap tile rows (VMEM headroom even on v5e's 16 MiB default)


def _round_up(x, m):
    return (x + m - 1) // m * m


# --------------------------------------------------------------------------
# Kernel
# --------------------------------------------------------------------------
def actor_kernel(x_ref, w2_ref, b2_ref, wmu_ref, bmu_ref, out_ref):
    # x:   [TILE_B, D]     f32 (cast to bf16 in-kernel, free under DMA slack)
    # w2:  [D, F2]         bf16     b2:  [1, F2]     f32
    # wmu: [F2, A_PAD]     bf16     bmu: [1, A_PAD]  f32
    # out: [TILE_B, A_PAD] bf16 (lane-dense, unmasked stores)
    x = x_ref[...].astype(jnp.bfloat16)
    # fc2 + ReLU (f32 accumulation on the MXU, elementwise in f32)
    h = jnp.dot(x, w2_ref[...], preferred_element_type=jnp.float32)
    h = jnp.maximum(h + b2_ref[...], 0.0)
    # mu layer + tanh
    mu = jnp.dot(h.astype(jnp.bfloat16), wmu_ref[...],
                 preferred_element_type=jnp.float32) + bmu_ref[...]
    out_ref[...] = jnp.tanh(mu).astype(out_ref.dtype)


# --------------------------------------------------------------------------
# Jitted inner forward on an already padded / bucketed batch
# --------------------------------------------------------------------------
@functools.partial(jax.jit, static_argnames=("tile_b",))
def _actor_forward_padded(x, w2, b2, wmu_p, bmu_p, *, tile_b):
    padded_B, D = x.shape
    F2 = w2.shape[1]
    a_pad = wmu_p.shape[1]
    assert padded_B % tile_b == 0

    grid = (padded_B // tile_b,)

    cost = pl.CostEstimate(
        flops=2 * padded_B * (D * F2 + F2 * a_pad),
        transcendentals=padded_B * a_pad,                       # tanh
        bytes_accessed=(x.size * 4 + w2.size * 2 + wmu_p.size * 2
                        + b2.size * 4 + bmu_p.size * 4
                        + padded_B * a_pad * 2),                # bf16 output
    )

    return pl.pallas_call(
        actor_kernel,
        out_shape=jax.ShapeDtypeStruct((padded_B, a_pad), jnp.bfloat16),
        grid=grid,
        in_specs=[
            # state tiles stream along the batch grid
            pl.BlockSpec((tile_b, D), lambda i: (i, 0)),
            # weights / biases: same block every step -> stay VMEM-resident
            pl.BlockSpec((D, F2), lambda i: (0, 0)),
            pl.BlockSpec((1, F2), lambda i: (0, 0)),
            pl.BlockSpec((F2, a_pad), lambda i: (0, 0)),
            pl.BlockSpec((1, a_pad), lambda i: (0, 0)),
        ],
        out_specs=pl.BlockSpec((tile_b, a_pad), lambda i: (i, 0)),
        compiler_params=pltpu.CompilerParams(
            # batch axis is embarrassingly parallel -> shards across TCs (v7x)
            dimension_semantics=("parallel",),
        ),
        cost_estimate=cost,
    )(x, w2, b2, wmu_p, bmu_p)


# --------------------------------------------------------------------------
# Public wrapper
# --------------------------------------------------------------------------
def _pick_batch_tiling(B):
    """Bucket the batch to a power of two and pick (padded_B, tile_b)."""
    padded_B = max(16, pl.next_power_of_2(B))
    if padded_B >= 32:
        # >= 2 balanced tiles so the 'parallel' axis can split across the two
        # TensorCores on v7x; still only 1-2 grid steps on v5e/v6e.
        tile_b = min(MAX_TILE, padded_B // 2)
    else:
        tile_b = padded_B            # single tile, multiple of 16
    assert padded_B % tile_b == 0 and tile_b % 16 == 0
    return padded_B, tile_b


def actor_forward(state, prepared):
    """state: [B, D] float32. prepared: output of prepare_params()."""
    B, _ = state.shape
    padded_B, tile_b = _pick_batch_tiling(B)
    x = state
    if padded_B != B:
        x = jnp.pad(x, ((0, padded_B - B), (0, 0)))
    out = _actor_forward_padded(
        x, prepared["w2"], prepared["b2"], prepared["wmu_p"], prepared["bmu_p"],
        tile_b=tile_b)
    # Slice off batch padding and lane padding; tiny [B, A] op.
    return out[:B, :prepared["n_actions"]].astype(jnp.float32)


# --------------------------------------------------------------------------
# Params: PyTorch-Linear-style init + one-time kernel-side preparation
# --------------------------------------------------------------------------
def init_params(key, in_dim, fc1_dims, fc2_dims, n_actions):
    """Deterministic synthetic init (PyTorch-Linear-style uniform bounds)."""
    ks = jax.random.split(key, 6)

    def linear(kw, kb, fan_in, fan_out):
        bound = 1.0 / jnp.sqrt(fan_in)
        w = jax.random.uniform(kw, (fan_out, fan_in), jnp.float32, -bound, bound)
        b = jax.random.uniform(kb, (fan_out,), jnp.float32, -bound, bound)
        return w, b

    # fc1 exists in the module but its output is discarded by forward().
    w1, b1 = linear(ks[0], ks[1], in_dim, fc1_dims)
    w2, b2 = linear(ks[2], ks[3], in_dim, fc2_dims)
    wmu, bmu = linear(ks[4], ks[5], fc2_dims, n_actions)

    return {
        "w1_t": w1.T, "b1": b1.reshape(1, -1),   # parity only; unused in forward
        "w2_t": w2.T, "b2": b2.reshape(1, -1),
        "wmu_t": wmu.T, "bmu": bmu.reshape(1, -1),
    }


def prepare_params(params):
    """One-time prep: cast weights to bf16 and lane-pad the mu layer to 128."""
    w2 = jnp.asarray(params["w2_t"], jnp.bfloat16)       # [D, F2]
    b2 = jnp.asarray(params["b2"], jnp.float32)          # [1, F2]
    wmu = params["wmu_t"]                                # [F2, A]
    bmu = params["bmu"]                                  # [1, A]
    F2, A = wmu.shape
    a_pad = _round_up(max(A, 1), LANE)
    wmu_p = jnp.zeros((F2, a_pad), jnp.bfloat16).at[:, :A].set(
        wmu.astype(jnp.bfloat16))
    bmu_p = jnp.zeros((1, a_pad), jnp.float32).at[:, :A].set(
        bmu.astype(jnp.float32))
    return {
        "w2": w2, "b2": b2, "wmu_p": wmu_p, "bmu_p": bmu_p,
        "n_actions": A,
    }


# --------------------------------------------------------------------------
# Pure-JAX references
# --------------------------------------------------------------------------
def reference_forward_f32(state, params):
    """f32 reference mirroring the PyTorch forward (fc1 branch dead)."""
    h = jnp.maximum(state @ params["w2_t"] + params["b2"], 0.0)
    return jnp.tanh(h @ params["wmu_t"] + params["bmu"])


def reference_forward_bf16(state, params):
    """Reference with the same bf16-input / f32-accumulation scheme."""
    x = state.astype(jnp.bfloat16)
    w2 = params["w2_t"].astype(jnp.bfloat16)
    wmu = params["wmu_t"].astype(jnp.bfloat16)
    h = jnp.dot(x, w2, preferred_element_type=jnp.float32) + params["b2"]
    h = jnp.maximum(h, 0.0)
    mu = jnp.dot(h.astype(jnp.bfloat16), wmu,
                 preferred_element_type=jnp.float32) + params["bmu"]
    return jnp.tanh(mu)


# --------------------------------------------------------------------------
if __name__ == "__main__":
    # Shapes consistent with the module defaults (fc1=fc2=512, n_actions=2);
    # Lazy input dim chosen = 16.
    D = 16
    FC1, FC2, N_ACTIONS = 512, 512, 2

    key = jax.random.PRNGKey(0)
    k_params, k_state = jax.random.split(key)
    params = init_params(k_params, D, FC1, FC2, N_ACTIONS)
    prepared = prepare_params(params)          # one-time weight prep (hoisted)

    # --- case 1: batch split into 2 large tiles (B=512 -> 2 x 256) ---
    B = 512
    state = jax.random.normal(k_state, (B, D), jnp.float32)
    out = jax.block_until_ready(actor_forward(state, prepared))
    assert out.shape == (B, N_ACTIONS)
    ref_bf16 = reference_forward_bf16(state, params)
    ref_f32 = reference_forward_f32(state, params)
    # bf16 output adds <= ~4e-3 quantization on top of bf16-matmul error.
    assert jnp.allclose(out, ref_bf16, atol=1.5e-2, rtol=1.5e-2)
    assert jnp.allclose(out, ref_f32, atol=5e-2, rtol=5e-2)

    # --- case 2: ragged small batch (bucketed to 32 -> 2 x 16 tiles) ---
    B2 = 20
    state2 = jax.random.normal(jax.random.PRNGKey(1), (B2, D), jnp.float32)
    out2 = jax.block_until_ready(actor_forward(state2, prepared))
    assert out2.shape == (B2, N_ACTIONS)
    assert jnp.allclose(out2, reference_forward_bf16(state2, params),
                        atol=1.5e-2, rtol=1.5e-2)

    # --- case 3: tiny batch (single 16-row tile) ---
    B3 = 5
    state3 = jax.random.normal(jax.random.PRNGKey(2), (B3, D), jnp.float32)
    out3 = jax.block_until_ready(actor_forward(state3, prepared))
    assert out3.shape == (B3, N_ACTIONS)
    assert jnp.allclose(out3, reference_forward_bf16(state3, params),
                        atol=1.5e-2, rtol=1.5e-2)

    print("KERNEL_OK")
</pallas_src>

<mosaic_0001>
module attributes {stable_mosaic.version = 11 : i64} {
  func.func @actor_kernel(%arg0: i32, %arg1: memref<256x16xf32, #tpu.memory_space<vmem>>, %arg2: memref<16x512xbf16, #tpu.memory_space<vmem>>, %arg3: memref<1x512xf32, #tpu.memory_space<vmem>>, %arg4: memref<512x128xbf16, #tpu.memory_space<vmem>>, %arg5: memref<1x128xf32, #tpu.memory_space<vmem>>, %arg6: memref<256x128xbf16, #tpu.memory_space<vmem>>) attributes {dimension_semantics = [#tpu.dimension_semantics<parallel>], iteration_bounds = array<i64: 2>, scalar_prefetch = 0 : i64, scratch_operands = 0 : i64, tpu.core_type = #tpu.core_type<tc>, window_params = [{transform_indices = @transform_0, window_bounds = array<i64: 256, 16>}, {pipeline_mode = #tpu.pipeline_mode<synchronous>, transform_indices = @transform_1, window_bounds = array<i64: 16, 512>}, {pipeline_mode = #tpu.pipeline_mode<synchronous>, transform_indices = @transform_2, window_bounds = array<i64: 1, 512>}, {pipeline_mode = #tpu.pipeline_mode<synchronous>, transform_indices = @transform_3, window_bounds = array<i64: 512, 128>}, {pipeline_mode = #tpu.pipeline_mode<synchronous>, transform_indices = @transform_4, window_bounds = array<i64: 1, 128>}, {transform_indices = @transform_5, window_bounds = array<i64: 256, 128>}]} {
    %c0 = arith.constant 0 : index
    %c0_0 = arith.constant 0 : index
    %0 = vector.load %arg1[%c0, %c0_0] : memref<256x16xf32, #tpu.memory_space<vmem>>, vector<256x16xf32>
    %1 = arith.truncf %0 : vector<256x16xf32> to vector<256x16xbf16>
    %c0_1 = arith.constant 0 : index
    %c0_2 = arith.constant 0 : index
    %2 = vector.load %arg2[%c0_1, %c0_2] : memref<16x512xbf16, #tpu.memory_space<vmem>>, vector<16x512xbf16>
    %cst = arith.constant dense<0.000000e+00> : vector<256x512xf32>
    %3 = tpu.matmul %1, %2, %cst {dimension_numbers = #tpu.dot_dimension_numbers<[1], [0], [0], [1], [0, 0, 1, 1], [], []>} : vector<256x16xbf16>, vector<16x512xbf16>, vector<256x512xf32> -> vector<256x512xf32>
    %c0_3 = arith.constant 0 : index
    %c0_4 = arith.constant 0 : index
    %4 = vector.load %arg3[%c0_3, %c0_4] : memref<1x512xf32, #tpu.memory_space<vmem>>, vector<1x512xf32>
    %5 = vector.broadcast %4 : vector<1x512xf32> to vector<256x512xf32>
    %6 = arith.addf %3, %5 : vector<256x512xf32>
    %cst_5 = arith.constant 0.000000e+00 : f32
    %7 = vector.broadcast %cst_5 : f32 to vector<256x512xf32>
    %8 = arith.maximumf %6, %7 : vector<256x512xf32>
    %9 = arith.truncf %8 : vector<256x512xf32> to vector<256x512xbf16>
    %c0_6 = arith.constant 0 : index
    %c0_7 = arith.constant 0 : index
    %10 = vector.load %arg4[%c0_6, %c0_7] : memref<512x128xbf16, #tpu.memory_space<vmem>>, vector<512x128xbf16>
    %cst_8 = arith.constant dense<0.000000e+00> : vector<256x128xf32>
    %11 = tpu.matmul %9, %10, %cst_8 {dimension_numbers = #tpu.dot_dimension_numbers<[1], [0], [0], [1], [0, 0, 1, 1], [], []>} : vector<256x512xbf16>, vector<512x128xbf16>, vector<256x128xf32> -> vector<256x128xf32>
    %c0_9 = arith.constant 0 : index
    %c0_10 = arith.constant 0 : index
    %12 = vector.load %arg5[%c0_9, %c0_10] : memref<1x128xf32, #tpu.memory_space<vmem>>, vector<1x128xf32>
    %13 = vector.broadcast %12 : vector<1x128xf32> to vector<256x128xf32>
    %14 = arith.addf %11, %13 : vector<256x128xf32>
    %15 = math.tanh %14 : vector<256x128xf32>
    %16 = arith.truncf %15 : vector<256x128xf32> to vector<256x128xbf16>
    %c0_11 = arith.constant 0 : index
    %c0_12 = arith.constant 0 : index
    %17 = vector.load %arg6[%c0_11, %c0_12] : memref<256x128xbf16, #tpu.memory_space<vmem>>, vector<256x128xbf16>
    tpu.vector_store %arg6[%c0_11, %c0_12], %16 {strides = array<i32>} : memref<256x128xbf16, #tpu.memory_space<vmem>>, vector<256x128xbf16>,
    return
  }
  func.func @transform_0(%arg0: i32) -> (i32, i32) {
    %c0_i32 = arith.constant 0 : i32
    %c0_i32_0 = arith.constant 0 : i32
    return %arg0, %c0_i32 : i32, i32
  }
  func.func @transform_1(%arg0: i32) -> (i32, i32) {
    %c0_i32 = arith.constant 0 : i32
    %c0_i32_0 = arith.constant 0 : i32
    %c0_i32_1 = arith.constant 0 : i32
    return %c0_i32, %c0_i32_0 : i32, i32
  }
  func.func @transform_2(%arg0: i32) -> (i32, i32) {
    %c0_i32 = arith.constant 0 : i32
    %c0_i32_0 = arith.constant 0 : i32
    %c0_i32_1 = arith.constant 0 : i32
    return %c0_i32, %c0_i32_0 : i32, i32
  }
  func.func @transform_3(%arg0: i32) -> (i32, i32) {
    %c0_i32 = arith.constant 0 : i32
    %c0_i32_0 = arith.constant 0 : i32
    %c0_i32_1 = arith.constant 0 : i32
    return %c0_i32, %c0_i32_0 : i32, i32
  }
  func.func @transform_4(%arg0: i32) -> (i32, i32) {
    %c0_i32 = arith.constant 0 : i32
    %c0_i32_0 = arith.constant 0 : i32
    %c0_i32_1 = arith.constant 0 : i32
    return %c0_i32, %c0_i32_0 : i32, i32
  }
  func.func @transform_5(%arg0: i32) -> (i32, i32) {
    %c0_i32 = arith.constant 0 : i32
    %c0_i32_0 = arith.constant 0 : i32
    return %arg0, %c0_i32 : i32, i32
  }
}

</mosaic_0001>

<llo_original>
// kernel: _actor_forward_padded.1
$region0: #{_actor_forward_padded.1}
  #allocation0 [shape = 'u32[]', space=smem, size = 0x4, offset = 0x4, fixed_abs, tag = 'smem constant byte address 0x4 - core index']
  #allocation1 [shape = 'u32[144,128]{1,0:T(1,128)}', space=vmem, size = 0x12000, scoped, tag = 'internal scratch']
  %s0 = inlined_call_operand.vmem [shape: f32[512,16], index: 0, kind: input, shape index: {}]
  %s1 = inlined_call_operand.vmem [shape: bf16[16,512], index: 1, kind: input, shape index: {}]
  %s2 = inlined_call_operand.vmem [shape: f32[1,512], index: 2, kind: input, shape index: {}]
  %s3 = inlined_call_operand.vmem [shape: bf16[512,128], index: 3, kind: input, shape index: {}]
  %s4 = inlined_call_operand.vmem [shape: f32[1,128], index: 4, kind: input, shape index: {}]
  %s5 = inlined_call_operand.hbm [shape: bf16[512,128], index: 5, kind: output, shape index: {}]
  %s6 = sld [smem:[#allocation0]]
  $region53: #{_actor_forward_padded.1} parent=0
    _
  %s8 = ssub.s32 1, %s6
  %s9 = scalar_select 0, %s8, %s6
  $region1: #{_actor_forward_padded.1} parent=0
    #allocation2 [shape = 'u8[131072]{0}', space=vmem, size = 0x20000, scoped, tag = 'output window, operand 0']
    #allocation3 [shape = 's32[2]{0}', space=sflag, size = 0x8, scoped, tag = 'scoped memory for _actor_forward_padded.1']
    %10 = vsyncpa [#allocation3], 0
    %s11 = scalar_lea.sflag [#allocation3], 1
    %12 = vsyncpa %s11, 0
    loop: start=0, step=1, limit=4
    $region2: #{_actor_forward_padded.1} parent=1 // loop_pre_header
      _
    $region3: #{_actor_forward_padded.1} parent=1 // loop_header
      %s14 = sphi 0, %s18
      %p15 = scmp.ge.s32.totalorder %s14, 4
      %s24 = sphi 0, %s26
      %s27 = sphi 0, %s24
      %s28 = sphi 0, %s27
      %s44 = sphi 0, %s28
      %s48 = sphi 0, %s48
      %s50 = sphi 0, %s48
      %s51 = sphi 0, %s50
      %s65 = sphi 0, %s51
      %s69 = sphi 0, %s69
      %s71 = sphi 0, %s69
      %s72 = sphi 0, %s71
      %s86 = sphi 0, %s72
      %s90 = sphi 0, %s90
      %s92 = sphi 0, %s90
      %s93 = sphi 0, %s92
      %s107 = sphi 0, %s93
      %s111 = sphi 0, %s111
      %s113 = sphi 0, %s111
      %s114 = sphi 0, %s113
      %s128 = sphi 0, %s114
      %s134 = sphi 0, %s136
      %s137 = sphi 0, %s134
      %s138 = sphi 0, %s137
      %s154 = sphi 0, %s138
    $region4: #{_actor_forward_padded.1} parent=1 // loop_header_branch
      %17 = sbr.rel (%p15) target = $region8
    $region5: #{_actor_forward_padded.1} parent=1 // loop_body
      %s19 = ssub.s32 %s14, 1
      %s20 = ssub.s32 %s14, 2
      %s21 = sadd.s32 %s14, 1
      %s22 = ssub.s32 %s14, %s21
      %p23 = scmp.eq.s32.totalorder %s22, 0
      %s25 = sadd.s32 %s24, 1
      %s26 = scalar_select %p23, %s24, %s25
      %p29 = pneg %p23
      %p30 = scmp.eq.s32.totalorder %s14, 1
      %p31 = por %p29, %p30
      %p32 = scmp.ne.s32.totalorder %s24, %s27
      %p33 = scmp.eq.s32.totalorder %s14, 0
      %p34 = por %p32, %p33
      %p35 = scmp.ne.s32.totalorder %s24, %s27
      %p36 = scmp.eq.s32.totalorder %s19, 1
      %p37 = por %p35, %p36
      %p38 = scmp.ne.s32.totalorder %s27, %s28
      %p39 = scmp.eq.s32.totalorder %s19, 0
      %p40 = por %p38, %p39
      %p41 = scmp.ne.s32.totalorder %s27, %s28
      %p42 = scmp.eq.s32.totalorder %s20, 1
      %p43 = por %p41, %p42
      %p45 = scmp.ne.s32.totalorder %s28, %s44
      %p46 = scmp.eq.s32.totalorder %s20, 0
      %p47 = por %p45, %p46
      %s49 = sadd.s32 %s48, 1
      %p52 = scmp.eq.s32.totalorder %s14, 1
      %p53 = scmp.ne.s32.totalorder %s48, %s50
      %p54 = scmp.eq.s32.totalorder %s14, 0
      %p55 = por %p53, %p54
      %p56 = scmp.ne.s32.totalorder %s48, %s50
      %p57 = scmp.eq.s32.totalorder %s19, 1
      %p58 = por %p56, %p57
      %p59 = scmp.ne.s32.totalorder %s50, %s51
      %p60 = scmp.eq.s32.totalorder %s19, 0
      %p61 = por %p59, %p60
      %p62 = scmp.ne.s32.totalorder %s50, %s51
      %p63 = scmp.eq.s32.totalorder %s20, 1
      %p64 = por %p62, %p63
      %p66 = scmp.ne.s32.totalorder %s51, %s65
      %p67 = scmp.eq.s32.totalorder %s20, 0
      %p68 = por %p66, %p67
      %s70 = sadd.s32 %s69, 1
      %p73 = scmp.eq.s32.totalorder %s14, 1
      %p74 = scmp.ne.s32.totalorder %s69, %s71
      %p75 = scmp.eq.s32.totalorder %s14, 0
      %p76 = por %p74, %p75
      %p77 = scmp.ne.s32.totalorder %s69, %s71
      %p78 = scmp.eq.s32.totalorder %s19, 1
      %p79 = por %p77, %p78
      %p80 = scmp.ne.s32.totalorder %s71, %s72
      %p81 = scmp.eq.s32.totalorder %s19, 0
      %p82 = por %p80, %p81
      %p83 = scmp.ne.s32.totalorder %s71, %s72
      %p84 = scmp.eq.s32.totalorder %s20, 1
      %p85 = por %p83, %p84
      %p87 = scmp.ne.s32.totalorder %s72, %s86
      %p88 = scmp.eq.s32.totalorder %s20, 0
      %p89 = por %p87, %p88
      %s91 = sadd.s32 %s90, 1
      %p94 = scmp.eq.s32.totalorder %s14, 1
      %p95 = scmp.ne.s32.totalorder %s90, %s92
      %p96 = scmp.eq.s32.totalorder %s14, 0
      %p97 = por %p95, %p96
      %p98 = scmp.ne.s32.totalorder %s90, %s92
      %p99 = scmp.eq.s32.totalorder %s19, 1
      %p100 = por %p98, %p99
      %p101 = scmp.ne.s32.totalorder %s92, %s93
      %p102 = scmp.eq.s32.totalorder %s19, 0
      %p103 = por %p101, %p102
      %p104 = scmp.ne.s32.totalorder %s92, %s93
      %p105 = scmp.eq.s32.totalorder %s20, 1
      %p106 = por %p104, %p105
      %p108 = scmp.ne.s32.totalorder %s93, %s107
      %p109 = scmp.eq.s32.totalorder %s20, 0
      %p110 = por %p108, %p109
      %s112 = sadd.s32 %s111, 1
      %p115 = scmp.eq.s32.totalorder %s14, 1
      %p116 = scmp.ne.s32.totalorder %s111, %s113
      %p117 = scmp.eq.s32.totalorder %s14, 0
      %p118 = por %p116, %p117
      %p119 = scmp.ne.s32.totalorder %s111, %s113
      %p120 = scmp.eq.s32.totalorder %s19, 1
      %p121 = por %p119, %p120
      %p122 = scmp.ne.s32.totalorder %s113, %s114
      %p123 = scmp.eq.s32.totalorder %s19, 0
      %p124 = por %p122, %p123
      %p125 = scmp.ne.s32.totalorder %s113, %s114
      %p126 = scmp.eq.s32.totalorder %s20, 1
      %p127 = por %p125, %p126
      %p129 = scmp.ne.s32.totalorder %s114, %s128
      %p130 = scmp.eq.s32.totalorder %s20, 0
      %p131 = por %p129, %p130
      %s132 = ssub.s32 %s14, %s21
      %p133 = scmp.eq.s32.totalorder %s132, 0
      %s135 = sadd.s32 %s134, 1
      %s136 = scalar_select %p133, %s134, %s135
      %p139 = pneg %p133
      %p140 = scmp.eq.s32.totalorder %s14, 1
      %p141 = por %p139, %p140
      %p142 = scmp.ne.s32.totalorder %s134, %s137
      %p143 = scmp.eq.s32.totalorder %s14, 0
      %p144 = por %p142, %p143
      %p145 = scmp.ne.s32.totalorder %s134, %s137
      %p146 = scmp.eq.s32.totalorder %s19, 1
      %p147 = por %p145, %p146
      %p148 = scmp.ne.s32.totalorder %s137, %s138
      %p149 = scmp.eq.s32.totalorder %s19, 0
      %p150 = por %p148, %p149
      %p151 = scmp.ne.s32.totalorder %s137, %s138
      %p152 = scmp.eq.s32.totalorder %s20, 1
      %p153 = por %p151, %p152
      %p155 = scmp.ne.s32.totalorder %s138, %s154
      %p156 = scmp.eq.s32.totalorder %s20, 0
      %p157 = por %p155, %p156
      %p158 = scmp.le.s32.totalorder 1, %s14
      %p159 = scmp.lt.s32.totalorder %s14, 3
      %p160 = pnand %p158, %p159
      %p161 = pneg %p160
      // Predicated region
      $region9: #{_actor_forward_padded.1} parent=5 // pred_check
        _
      $region10: #{_actor_forward_padded.1} parent=5 // pred_check_branch
        %163 = sbr.rel (%p160) target = $region12
      $region11: #{_actor_forward_padded.1} parent=5 // pred_region
        %s164 = ssub.s32 %s14, 1
        // Predicated region
        $region13: #{_actor_forward_padded.1} parent=11 // pred_check
          %p165 = pneg %p61
        $region14: #{_actor_forward_padded.1} parent=11 // pred_check_branch
          %167 = sbr.rel (%p165) target = $region16
        $region15: #{_actor_forward_padded.1} parent=11 // pred_region
          _
        $region16: #{_actor_forward_padded.1} parent=11 // pred_fallthru
          _
        // Predicated region
        $region17: #{_actor_forward_padded.1} parent=11 // pred_check
          %p168 = pneg %p82
        $region18: #{_actor_forward_padded.1} parent=11 // pred_check_branch
          %170 = sbr.rel (%p168) target = $region20
        $region19: #{_actor_forward_padded.1} parent=11 // pred_region
          _
        $region20: #{_actor_forward_padded.1} parent=11 // pred_fallthru
          _
        // Predicated region
        $region21: #{_actor_forward_padded.1} parent=11 // pred_check
          %p171 = pneg %p103
        $region22: #{_actor_forward_padded.1} parent=11 // pred_check_branch
          %173 = sbr.rel (%p171) target = $region24
        $region23: #{_actor_forward_padded.1} parent=11 // pred_region
          _
        $region24: #{_actor_forward_padded.1} parent=11 // pred_fallthru
          _
        // Predicated region
        $region25: #{_actor_forward_padded.1} parent=11 // pred_check
          %p174 = pneg %p124
        $region26: #{_actor_forward_padded.1} parent=11 // pred_check_branch
          %176 = sbr.rel (%p174) target = $region28
        $region27: #{_actor_forward_padded.1} parent=11 // pred_region
          _
        $region28: #{_actor_forward_padded.1} parent=11 // pred_fallthru
          _
      $region12: #{_actor_forward_padded.1} parent=5 // pred_fallthru
        _
      %p177 = scmp.lt.s32.totalorder %s14, 2
      // Predicated region
      $region29: #{_actor_forward_padded.1} parent=5 // pred_check
        %p178 = pneg %p177
      $region30: #{_actor_forward_padded.1} parent=5 // pred_check_branch
        %180 = sbr.rel (%p178) target = $region32
      $region31: #{_actor_forward_padded.1} parent=5 // pred_region
        // Predicated region
        $region33: #{_actor_forward_padded.1} parent=31 // pred_check
          %p181 = pneg %p34
        $region34: #{_actor_forward_padded.1} parent=31 // pred_check_branch
          %183 = sbr.rel (%p181) target = $region36
        $region35: #{_actor_forward_padded.1} parent=31 // pred_region
          %s184 = smul.u32 32, %s14
          %p185 = scmp.lt.s32.totalorder %s184, 63
          %s186 = scalar_select %p185, %s184, 63
          %s187 = smul.addr %s186, 8
          %s188 = scalar_lea.vmem %s0, %s187
          %s189 = smul.u32 32, %s14
        $region36: #{_actor_forward_padded.1} parent=31 // pred_fallthru
          _
      $region32: #{_actor_forward_padded.1} parent=5 // pred_fallthru
        _
      %p190 = scmp.le.s32.totalorder 1, %s14
      %p191 = scmp.lt.s32.totalorder %s14, 3
      %p192 = pnand %p190, %p191
      %p193 = pneg %p192
      // Predicated region
      $region37: #{_actor_forward_padded.1} parent=5 // pred_check
        _
      $region38: #{_actor_forward_padded.1} parent=5 // pred_check_branch
        %195 = sbr.rel (%p192) target = $region40
      $region39: #{_actor_forward_padded.1} parent=5 // pred_region
        %s196 = ssub.s32 %s14, 1
        %s197 = smul.u32 32, %s19
        %p198 = scmp.lt.s32.totalorder %s197, 63
        %s199 = scalar_select %p198, %s197, 63
        %s200 = smul.addr %s199, 8
        %s201 = scalar_lea.vmem %s0, %s200
        %p202 = pneg %p40
        %p203 = pneg %p37
        %p204 = pneg %p61
        %p205 = pneg %p58
        %p206 = pneg %p82
        %p207 = pneg %p79
        %p208 = pneg %p103
        %p209 = pneg %p100
        %p210 = pneg %p124
        %p211 = pneg %p121
        %p212 = pneg %p150
        %p213 = pneg %p147
        %s214 = sand.u32 %s137, 1
        %s215 = scalar_lea.sflag [#allocation3], %s214
        %s216 = sand.u32 %s137, 1
        %s217 = smul.addr %s216, 128
        %s218 = scalar_lea.vmem [#allocation2], %s217
        %s219 = smul.u32 32, %s19
        %p220 = scmp.lt.s32.totalorder %s219, 63
        %s221 = scalar_select %p220, %s219, 63
        %s222 = smul.addr %s221, 8
        %s223 = scalar_lea.vmem %s0, %s222
        %s224 = smul.u32 32, %s19
        %s225 = smul.u32 32, %s19
        %v227 = vld [vmem:[%s223] sm:$0xff]
        %v228 = vld [vmem:[%s223 + $0x8] sm:$0xff]
        %v229 = vld [vmem:[%s223 + $0x10] sm:$0xff]
        %v230 = vld [vmem:[%s223 + $0x18] sm:$0xff]
        %v231 = vld [vmem:[%s223 + $0x20] sm:$0xff]
        %v232 = vld [vmem:[%s223 + $0x28] sm:$0xff]
        %v233 = vld [vmem:[%s223 + $0x30] sm:$0xff]
        %v234 = vld [vmem:[%s223 + $0x38] sm:$0xff]
        %v235 = vld [vmem:[%s223 + $0x40] sm:$0xff]
        %v236 = vld [vmem:[%s223 + $0x48] sm:$0xff]
        %v237 = vld [vmem:[%s223 + $0x50] sm:$0xff]
        %v238 = vld [vmem:[%s223 + $0x58] sm:$0xff]
        %v239 = vld [vmem:[%s223 + $0x60] sm:$0xff]
        %v240 = vld [vmem:[%s223 + $0x68] sm:$0xff]
        %v241 = vld [vmem:[%s223 + $0x70] sm:$0xff]
        %v242 = vld [vmem:[%s223 + $0x78] sm:$0xff]
        %v243 = vld [vmem:[%s223 + $0x80] sm:$0xff]
        %v244 = vld [vmem:[%s223 + $0x88] sm:$0xff]
        %v245 = vld [vmem:[%s223 + $0x90] sm:$0xff]
        %v246 = vld [vmem:[%s223 + $0x98] sm:$0xff]
        %v247 = vld [vmem:[%s223 + $0xa0] sm:$0xff]
        %v248 = vld [vmem:[%s223 + $0xa8] sm:$0xff]
        %v249 = vld [vmem:[%s223 + $0xb0] sm:$0xff]
        %v250 = vld [vmem:[%s223 + $0xb8] sm:$0xff]
        %v251 = vld [vmem:[%s223 + $0xc0] sm:$0xff]
        %v252 = vld [vmem:[%s223 + $0xc8] sm:$0xff]
        %v253 = vld [vmem:[%s223 + $0xd0] sm:$0xff]
        %v254 = vld [vmem:[%s223 + $0xd8] sm:$0xff]
        %v255 = vld [vmem:[%s223 + $0xe0] sm:$0xff]
        %v256 = vld [vmem:[%s223 + $0xe8] sm:$0xff]
        %v257 = vld [vmem:[%s223 + $0xf0] sm:$0xff]
        %v258 = vld [vmem:[%s223 + $0xf8] sm:$0xff]
        %v259 = vpack.c.bf16 %v228, %v227
        %v260 = vpack.c.bf16 %v230, %v229
        %v261 = vpack.c.bf16 %v232, %v231
        %v262 = vpack.c.bf16 %v234, %v233
        %v263 = vpack.c.bf16 %v236, %v235
        %v264 = vpack.c.bf16 %v238, %v237
        %v265 = vpack.c.bf16 %v240, %v239
        %v266 = vpack.c.bf16 %v242, %v241
        %v267 = vpack.c.bf16 %v244, %v243
        %v268 = vpack.c.bf16 %v246, %v245
        %v269 = vpack.c.bf16 %v248, %v247
        %v270 = vpack.c.bf16 %v250, %v249
        %v271 = vpack.c.bf16 %v252, %v251
        %v272 = vpack.c.bf16 %v254, %v253
        %v273 = vpack.c.bf16 %v256, %v255
        %v274 = vpack.c.bf16 %v258, %v257
        %v275 = vld [vmem:[%s1] sm:$0xff]
        %v276 = vld [vmem:[%s1 + $0x8] sm:$0xff]
        %v277 = vld [vmem:[%s1 + $0x10] sm:$0xff]
        %v278 = vld [vmem:[%s1 + $0x18] sm:$0xff]
        %v279 = vld [vmem:[%s2] sm:$0xf]
        %v281 = vlaneseq
        %v282 = vshrl.u32 %v281, 7
        %v283 = vsub.s32 0, %v282
        %v284 = vrot.slane %v279, %v283
        %v285 = vlaneseq
        %v286 = vshrl.u32 %v285, 7
        %v287 = vsub.s32 1, %v286
        %v288 = vrot.slane %v279, %v287
        %v289 = vlaneseq
        %v290 = vshrl.u32 %v289, 7
        %v291 = vsub.s32 2, %v290
        %v292 = vrot.slane %v279, %v291
        %v293 = vlaneseq
        %v294 = vshrl.u32 %v293, 7
        %v295 = vsub.s32 3, %v294
        %v296 = vrot.slane %v279, %v295
        %v305 = vunpack.c.l.b16 %v275
        %v306 = vunpack.c.h.b16 %v275
        %v307 = vunpack.c.l.b16 %v276
        %v308 = vunpack.c.h.b16 %v276
        %v309 = vunpack.c.l.b16 %v277
        %v310 = vunpack.c.h.b16 %v277
        %v311 = vunpack.c.l.b16 %v278
        %v312 = vunpack.c.h.b16 %v278
        %v313 = vpack.c.b16 %v309, %v305
        %v314 = vpack.c.b16 %v310, %v306
        %v315 = vpack.c.b16 %v311, %v307
        %v316 = vpack.c.b16 %v312, %v308
        %vm321 = vcmask 130048
        %v323 = vsel %vm321, %v259, 0
        %v326 = vsel %vm321, %v260, 0
        %v329 = vsel %vm321, %v261, 0
        %v332 = vsel %vm321, %v262, 0
        %v335 = vsel %vm321, %v263, 0
        %v338 = vsel %vm321, %v264, 0
        %v341 = vsel %vm321, %v265, 0
        %v344 = vsel %vm321, %v266, 0
        %v347 = vsel %vm321, %v267, 0
        %v350 = vsel %vm321, %v268, 0
        %v353 = vsel %vm321, %v269, 0
        %v356 = vsel %vm321, %v270, 0
        %v359 = vsel %vm321, %v271, 0
        %v362 = vsel %vm321, %v272, 0
        %v365 = vsel %vm321, %v273, 0
        %v368 = vsel %vm321, %v274, 0
        %370 = vmatprep.subr.bf16.mxu0 %v314
        %371 = vmatpush1.bf16.msra.mxu0 %v313
        %372 = vmatprep.subr.bf16.mxu0 0
        %373 = vmatpush1.bf16.msra.mxu0 0
        %374 = vmatprep.subr.bf16.mxu0 0
        %375 = vmatpush1.bf16.msra.mxu0 0
        %376 = vmatprep.subr.bf16.mxu0 0
        %377 = vmatpush1.bf16.msra.mxu0 0
        %378 = vmatprep.subr.bf16.mxu0 0
        %379 = vmatpush1.bf16.msra.mxu0 0
        %380 = vmatprep.subr.bf16.mxu0 0
        %381 = vmatpush1.bf16.msra.mxu0 0
        %382 = vmatprep.subr.bf16.mxu0 0
        %383 = vmatpush1.bf16.msra.mxu0 0
        %384 = vmatprep.subr.bf16.mxu0 0
        %385 = vmatpush1.bf16.msra.mxu0 0
        %386 = vmatprep.subr.bf16.mxu0 0
        %387 = vmatpush1.bf16.msra.mxu0 0
        %388 = vmatprep.subr.bf16.mxu0 0
        %389 = vmatpush1.bf16.msra.mxu0 0
        %390 = vmatprep.subr.bf16.mxu0 0
        %391 = vmatpush1.bf16.msra.mxu0 0
        %392 = vmatprep.subr.bf16.mxu0 0
        %393 = vmatpush1.bf16.msra.mxu0 0
        %394 = vmatprep.subr.bf16.mxu0 0
        %395 = vmatpush1.bf16.msra.mxu0 0
        %396 = vmatprep.subr.bf16.mxu0 0
        %397 = vmatpush1.bf16.msra.mxu0 0
        %398 = vmatprep.subr.bf16.mxu0 0
        %399 = vmatpush1.bf16.msra.mxu0 0
        %400 = vmatprep.subr.bf16.mxu0 0
        %401 = vmatpush1.bf16.msra.mxu0 0
        %402 = vmatprep.mubr.bf16.mxu0 0
        %403 = vmatmul.mubr.bf16.gmra.mrb[0].mxu0 %v323
        %v404 = vpop.f32.mrb[0].mxu0
        %v405 = vadd.f32 %v284, %v404
        %v406 = vpop.f32.mrb[0].mxu0
        %v407 = vadd.f32 %v288, %v406
        %v408 = vpop.f32.mrb[0].mxu0
        %v409 = vadd.f32 %v284, %v408
        %v410 = vpop.f32.mrb[0].mxu0
        %v411 = vadd.f32 %v288, %v410
        %412 = vmatprep.mubr.bf16.mxu0 0
        %413 = vmatmul.mubr.bf16.gmra.mrb[0].mxu0 %v326
        %v414 = vpop.f32.mrb[0].mxu0
        %v415 = vadd.f32 %v284, %v414
        %v416 = vpop.f32.mrb[0].mxu0
        %v417 = vadd.f32 %v288, %v416
        %v418 = vpop.f32.mrb[0].mxu0
        %v419 = vadd.f32 %v284, %v418
        %v420 = vpop.f32.mrb[0].mxu0
        %v421 = vadd.f32 %v288, %v420
        %422 = vmatprep.mubr.bf16.mxu0 0
        %423 = vmatmul.mubr.bf16.gmra.mrb[0].mxu0 %v329
        %v424 = vpop.f32.mrb[0].mxu0
        %v425 = vadd.f32 %v284, %v424
        %v426 = vpop.f32.mrb[0].mxu0
        %v427 = vadd.f32 %v288, %v426
        %v428 = vpop.f32.mrb[0].mxu0
        %v429 = vadd.f32 %v284, %v428
        %v430 = vpop.f32.mrb[0].mxu0
        %v431 = vadd.f32 %v288, %v430
        %432 = vmatprep.mubr.bf16.mxu0 0
        %433 = vmatmul.mubr.bf16.gmra.mrb[0].mxu0 %v332
        %v434 = vpop.f32.mrb[0].mxu0
        %v435 = vadd.f32 %v284, %v434
        %v436 = vpop.f32.mrb[0].mxu0
        %v437 = vadd.f32 %v288, %v436
        %v438 = vpop.f32.mrb[0].mxu0
        %v439 = vadd.f32 %v284, %v438
        %v440 = vpop.f32.mrb[0].mxu0
        %v441 = vadd.f32 %v288, %v440
        %442 = vmatprep.mubr.bf16.mxu0 0
        %443 = vmatmul.mubr.bf16.gmra.mrb[0].mxu0 %v335
        %v444 = vpop.f32.mrb[0].mxu0
        %v445 = vadd.f32 %v284, %v444
        %v446 = vpop.f32.mrb[0].mxu0
        %v447 = vadd.f32 %v288, %v446
        %v448 = vpop.f32.mrb[0].mxu0
        %v449 = vadd.f32 %v284, %v448
        %v450 = vpop.f32.mrb[0].mxu0
        %v451 = vadd.f32 %v288, %v450
        %452 = vmatprep.mubr.bf16.mxu0 0
        %453 = vmatmul.mubr.bf16.gmra.mrb[0].mxu0 %v338
        %v454 = vpop.f32.mrb[0].mxu0
        %v455 = vadd.f32 %v284, %v454
        %v456 = vpop.f32.mrb[0].mxu0
        %v457 = vadd.f32 %v288, %v456
        %v458 = vpop.f32.mrb[0].mxu0
        %v459 = vadd.f32 %v284, %v458
        %v460 = vpop.f32.mrb[0].mxu0
        %v461 = vadd.f32 %v288, %v460
        %462 = vmatprep.mubr.bf16.mxu0 0
        %463 = vmatmul.mubr.bf16.gmra.mrb[0].mxu0 %v341
        %v464 = vpop.f32.mrb[0].mxu0
        %v465 = vadd.f32 %v284, %v464
        %v466 = vpop.f32.mrb[0].mxu0
        %v467 = vadd.f32 %v288, %v466
        %v468 = vpop.f32.mrb[0].mxu0
        %v469 = vadd.f32 %v284, %v468
        %v470 = vpop.f32.mrb[0].mxu0
        %v471 = vadd.f32 %v288, %v470
        %472 = vmatprep.mubr.bf16.mxu0 0
        %473 = vmatmul.mubr.bf16.gmra.mrb[0].mxu0 %v344
        %v474 = vpop.f32.mrb[0].mxu0
        %v475 = vadd.f32 %v284, %v474
        %v476 = vpop.f32.mrb[0].mxu0
        %v477 = vadd.f32 %v288, %v476
        %v478 = vpop.f32.mrb[0].mxu0
        %v479 = vadd.f32 %v284, %v478
        %v480 = vpop.f32.mrb[0].mxu0
        %v481 = vadd.f32 %v288, %v480
        %482 = vmatprep.mubr.bf16.mxu0 0
        %483 = vmatmul.mubr.bf16.gmra.mrb[0].mxu0 %v347
        %v484 = vpop.f32.mrb[0].mxu0
        %v485 = vadd.f32 %v284, %v484
        %v486 = vpop.f32.mrb[0].mxu0
        %v487 = vadd.f32 %v288, %v486
        %v488 = vpop.f32.mrb[0].mxu0
        %v489 = vadd.f32 %v284, %v488
        %v490 = vpop.f32.mrb[0].mxu0
        %v491 = vadd.f32 %v288, %v490
        %492 = vmatprep.mubr.bf16.mxu0 0
        %493 = vmatmul.mubr.bf16.gmra.mrb[0].mxu0 %v350
        %v494 = vpop.f32.mrb[0].mxu0
        %v495 = vadd.f32 %v284, %v494
        %v496 = vpop.f32.mrb[0].mxu0
        %v497 = vadd.f32 %v288, %v496
        %v498 = vpop.f32.mrb[0].mxu0
        %v499 = vadd.f32 %v284, %v498
        %v500 = vpop.f32.mrb[0].mxu0
        %v501 = vadd.f32 %v288, %v500
        %502 = vmatprep.mubr.bf16.mxu0 0
        %503 = vmatmul.mubr.bf16.gmra.mrb[0].mxu0 %v353
        %v504 = vpop.f32.mrb[0].mxu0
        %v505 = vadd.f32 %v284, %v504
        %v506 = vpop.f32.mrb[0].mxu0
        %v507 = vadd.f32 %v288, %v506
        %v508 = vpop.f32.mrb[0].mxu0
        %v509 = vadd.f32 %v284, %v508
        %v510 = vpop.f32.mrb[0].mxu0
        %v511 = vadd.f32 %v288, %v510
        %512 = vmatprep.mubr.bf16.mxu0 0
        %513 = vmatmul.mubr.bf16.gmra.mrb[0].mxu0 %v356
        %v514 = vpop.f32.mrb[0].mxu0
        %v515 = vadd.f32 %v284, %v514
        %v516 = vpop.f32.mrb[0].mxu0
        %v517 = vadd.f32 %v288, %v516
        %v518 = vpop.f32.mrb[0].mxu0
        %v519 = vadd.f32 %v284, %v518
        %v520 = vpop.f32.mrb[0].mxu0
        %v521 = vadd.f32 %v288, %v520
        %522 = vmatprep.mubr.bf16.mxu0 0
        %523 = vmatmul.mubr.bf16.gmra.mrb[0].mxu0 %v359
        %v524 = vpop.f32.mrb[0].mxu0
        %v525 = vadd.f32 %v284, %v524
        %v526 = vpop.f32.mrb[0].mxu0
        %v527 = vadd.f32 %v288, %v526
        %v528 = vpop.f32.mrb[0].mxu0
        %v529 = vadd.f32 %v284, %v528
        %v530 = vpop.f32.mrb[0].mxu0
        %v531 = vadd.f32 %v288, %v530
        %532 = vmatprep.mubr.bf16.mxu0 0
        %533 = vmatmul.mubr.bf16.gmra.mrb[0].mxu0 %v362
        %v534 = vpop.f32.mrb[0].mxu0
        %v535 = vadd.f32 %v284, %v534
        %v536 = vpop.f32.mrb[0].mxu0
        %v537 = vadd.f32 %v288, %v536
        %v538 = vpop.f32.mrb[0].mxu0
        %v539 = vadd.f32 %v284, %v538
        %v540 = vpop.f32.mrb[0].mxu0
        %v541 = vadd.f32 %v288, %v540
        %542 = vmatprep.mubr.bf16.mxu0 0
        %543 = vmatmul.mubr.bf16.gmra.mrb[0].mxu0 %v365
        %v544 = vpop.f32.mrb[0].mxu0
        %v545 = vadd.f32 %v284, %v544
        %v546 = vpop.f32.mrb[0].mxu0
        %v547 = vadd.f32 %v288, %v546
        %v548 = vpop.f32.mrb[0].mxu0
        %v549 = vadd.f32 %v284, %v548
        %v550 = vpop.f32.mrb[0].mxu0
        %v551 = vadd.f32 %v288, %v550
        %552 = vmatprep.mubr.bf16.mxu0 0
        %553 = vmatmul.mubr.bf16.gmra.mrb[0].mxu0 %v368
        %v554 = vpop.f32.mrb[0].mxu0
        %v555 = vadd.f32 %v284, %v554
        %v556 = vpop.f32.mrb[0].mxu0
        %v557 = vadd.f32 %v288, %v556
        %v558 = vpop.f32.mrb[0].mxu0
        %v559 = vadd.f32 %v284, %v558
        %v560 = vpop.f32.mrb[0].mxu0
        %v561 = vadd.f32 %v288, %v560
        %562 = vdwg.mxu0
        %563 = vmatprep.subr.bf16.mxu0 %v316
        %564 = vmatpush1.bf16.msra.mxu0 %v315
        %565 = vmatprep.subr.bf16.mxu0 0
        %566 = vmatpush1.bf16.msra.mxu0 0
        %567 = vmatprep.subr.bf16.mxu0 0
        %568 = vmatpush1.bf16.msra.mxu0 0
        %569 = vmatprep.subr.bf16.mxu0 0
        %570 = vmatpush1.bf16.msra.mxu0 0
        %571 = vmatprep.subr.bf16.mxu0 0
        %572 = vmatpush1.bf16.msra.mxu0 0
        %573 = vmatprep.subr.bf16.mxu0 0
        %574 = vmatpush1.bf16.msra.mxu0 0
        %575 = vmatprep.subr.bf16.mxu0 0
        %576 = vmatpush1.bf16.msra.mxu0 0
        %577 = vmatprep.subr.bf16.mxu0 0
        %578 = vmatpush1.bf16.msra.mxu0 0
        %579 = vmatprep.subr.bf16.mxu0 0
        %580 = vmatpush1.bf16.msra.mxu0 0
        %581 = vmatprep.subr.bf16.mxu0 0
        %582 = vmatpush1.bf16.msra.mxu0 0
        %583 = vmatprep.subr.bf16.mxu0 0
        %584 = vmatpush1.bf16.msra.mxu0 0
        %585 = vmatprep.subr.bf16.mxu0 0
        %586 = vmatpush1.bf16.msra.mxu0 0
        %587 = vmatprep.subr.bf16.mxu0 0
        %588 = vmatpush1.bf16.msra.mxu0 0
        %589 = vmatprep.subr.bf16.mxu0 0
        %590 = vmatpush1.bf16.msra.mxu0 0
        %591 = vmatprep.subr.bf16.mxu0 0
        %592 = vmatpush1.bf16.msra.mxu0 0
        %593 = vmatprep.subr.bf16.mxu0 0
        %594 = vmatpush1.bf16.msra.mxu0 0
        %595 = vmatprep.mubr.bf16.mxu0 0
        %596 = vmatmul.mubr.bf16.gmra.mrb[0].mxu0 %v323
        %v597 = vpop.f32.mrb[0].mxu0
        %v598 = vadd.f32 %v292, %v597
        %v599 = vpop.f32.mrb[0].mxu0
        %v600 = vadd.f32 %v296, %v599
        %v601 = vpop.f32.mrb[0].mxu0
        %v602 = vadd.f32 %v292, %v601
        %v603 = vpop.f32.mrb[0].mxu0
        %v604 = vadd.f32 %v296, %v603
        %605 = vmatprep.mubr.bf16.mxu0 0
        %606 = vmatmul.mubr.bf16.gmra.mrb[0].mxu0 %v326
        %v607 = vpop.f32.mrb[0].mxu0
        %v608 = vadd.f32 %v292, %v607
        %v609 = vpop.f32.mrb[0].mxu0
        %v610 = vadd.f32 %v296, %v609
        %v611 = vpop.f32.mrb[0].mxu0
        %v612 = vadd.f32 %v292, %v611
        %v613 = vpop.f32.mrb[0].mxu0
        %v614 = vadd.f32 %v296, %v613
        %615 = vmatprep.mubr.bf16.mxu0 0
        %616 = vmatmul.mubr.bf16.gmra.mrb[0].mxu0 %v329
        %v617 = vpop.f32.mrb[0].mxu0
        %v618 = vadd.f32 %v292, %v617
        %v619 = vpop.f32.mrb[0].mxu0
        %v620 = vadd.f32 %v296, %v619
        %v621 = vpop.f32.mrb[0].mxu0
        %v622 = vadd.f32 %v292, %v621
        %v623 = vpop.f32.mrb[0].mxu0
        %v624 = vadd.f32 %v296, %v623
        %625 = vmatprep.mubr.bf16.mxu0 0
        %626 = vmatmul.mubr.bf16.gmra.mrb[0].mxu0 %v332
        %v627 = vpop.f32.mrb[0].mxu0
        %v628 = vadd.f32 %v292, %v627
        %v629 = vpop.f32.mrb[0].mxu0
        %v630 = vadd.f32 %v296, %v629
        %v631 = vpop.f32.mrb[0].mxu0
        %v632 = vadd.f32 %v292, %v631
        %v633 = vpop.f32.mrb[0].mxu0
        %v634 = vadd.f32 %v296, %v633
        %635 = vmatprep.mubr.bf16.mxu0 0
        %636 = vmatmul.mubr.bf16.gmra.mrb[0].mxu0 %v335
        %v637 = vpop.f32.mrb[0].mxu0
        %v638 = vadd.f32 %v292, %v637
        %v639 = vpop.f32.mrb[0].mxu0
        %v640 = vadd.f32 %v296, %v639
        %v641 = vpop.f32.mrb[0].mxu0
        %v642 = vadd.f32 %v292, %v641
        %v643 = vpop.f32.mrb[0].mxu0
        %v644 = vadd.f32 %v296, %v643
        %645 = vmatprep.mubr.bf16.mxu0 0
        %646 = vmatmul.mubr.bf16.gmra.mrb[0].mxu0 %v338
        %v647 = vpop.f32.mrb[0].mxu0
        %v648 = vadd.f32 %v292, %v647
        %v649 = vpop.f32.mrb[0].mxu0
        %v650 = vadd.f32 %v296, %v649
        %v651 = vpop.f32.mrb[0].mxu0
        %v652 = vadd.f32 %v292, %v651
        %v653 = vpop.f32.mrb[0].mxu0
        %v654 = vadd.f32 %v296, %v653
        %655 = vmatprep.mubr.bf16.mxu0 0
        %656 = vmatmul.mubr.bf16.gmra.mrb[0].mxu0 %v341
        %v657 = vpop.f32.mrb[0].mxu0
        %v658 = vadd.f32 %v292, %v657
        %v659 = vpop.f32.mrb[0].mxu0
        %v660 = vadd.f32 %v296, %v659
        %v661 = vpop.f32.mrb[0].mxu0
        %v662 = vadd.f32 %v292, %v661
        %v663 = vpop.f32.mrb[0].mxu0
        %v664 = vadd.f32 %v296, %v663
        %665 = vmatprep.mubr.bf16.mxu0 0
        %666 = vmatmul.mubr.bf16.gmra.mrb[0].mxu0 %v344
        %v667 = vpop.f32.mrb[0].mxu0
        %v668 = vadd.f32 %v292, %v667
        %v669 = vpop.f32.mrb[0].mxu0
        %v670 = vadd.f32 %v296, %v669
        %v671 = vpop.f32.mrb[0].mxu0
        %v672 = vadd.f32 %v292, %v671
        %v673 = vpop.f32.mrb[0].mxu0
        %v674 = vadd.f32 %v296, %v673
        %675 = vmatprep.mubr.bf16.mxu0 0
        %676 = vmatmul.mubr.bf16.gmra.mrb[0].mxu0 %v347
        %v677 = vpop.f32.mrb[0].mxu0
        %v678 = vadd.f32 %v292, %v677
        %v679 = vpop.f32.mrb[0].mxu0
        %v680 = vadd.f32 %v296, %v679
        %v681 = vpop.f32.mrb[0].mxu0
        %v682 = vadd.f32 %v292, %v681
        %v683 = vpop.f32.mrb[0].mxu0
        %v684 = vadd.f32 %v296, %v683
        %685 = vmatprep.mubr.bf16.mxu0 0
        %686 = vmatmul.mubr.bf16.gmra.mrb[0].mxu0 %v350
        %v687 = vpop.f32.mrb[0].mxu0
        %v688 = vadd.f32 %v292, %v687
        %v689 = vpop.f32.mrb[0].mxu0
        %v690 = vadd.f32 %v296, %v689
        %v691 = vpop.f32.mrb[0].mxu0
        %v692 = vadd.f32 %v292, %v691
        %v693 = vpop.f32.mrb[0].mxu0
        %v694 = vadd.f32 %v296, %v693
        %695 = vmatprep.mubr.bf16.mxu0 0
        %696 = vmatmul.mubr.bf16.gmra.mrb[0].mxu0 %v353
        %v697 = vpop.f32.mrb[0].mxu0
        %v698 = vadd.f32 %v292, %v697
        %v699 = vpop.f32.mrb[0].mxu0
        %v700 = vadd.f32 %v296, %v699
        %v701 = vpop.f32.mrb[0].mxu0
        %v702 = vadd.f32 %v292, %v701
        %v703 = vpop.f32.mrb[0].mxu0
        %v704 = vadd.f32 %v296, %v703
        %705 = vmatprep.mubr.bf16.mxu0 0
        %706 = vmatmul.mubr.bf16.gmra.mrb[0].mxu0 %v356
        %v707 = vpop.f32.mrb[0].mxu0
        %v708 = vadd.f32 %v292, %v707
        %v709 = vpop.f32.mrb[0].mxu0
        %v710 = vadd.f32 %v296, %v709
        %v711 = vpop.f32.mrb[0].mxu0
        %v712 = vadd.f32 %v292, %v711
        %v713 = vpop.f32.mrb[0].mxu0
        %v714 = vadd.f32 %v296, %v713
        %715 = vmatprep.mubr.bf16.mxu0 0
        %716 = vmatmul.mubr.bf16.gmra.mrb[0].mxu0 %v359
        %v717 = vpop.f32.mrb[0].mxu0
        %v718 = vadd.f32 %v292, %v717
        %v719 = vpop.f32.mrb[0].mxu0
        %v720 = vadd.f32 %v296, %v719
        %v721 = vpop.f32.mrb[0].mxu0
        %v722 = vadd.f32 %v292, %v721
        %v723 = vpop.f32.mrb[0].mxu0
        %v724 = vadd.f32 %v296, %v723
        %725 = vmatprep.mubr.bf16.mxu0 0
        %726 = vmatmul.mubr.bf16.gmra.mrb[0].mxu0 %v362
        %v727 = vpop.f32.mrb[0].mxu0
        %v728 = vadd.f32 %v292, %v727
        %v729 = vpop.f32.mrb[0].mxu0
        %v730 = vadd.f32 %v296, %v729
        %v731 = vpop.f32.mrb[0].mxu0
        %v732 = vadd.f32 %v292, %v731
        %v733 = vpop.f32.mrb[0].mxu0
        %v734 = vadd.f32 %v296, %v733
        %735 = vmatprep.mubr.bf16.mxu0 0
        %736 = vmatmul.mubr.bf16.gmra.mrb[0].mxu0 %v365
        %v737 = vpop.f32.mrb[0].mxu0
        %v738 = vadd.f32 %v292, %v737
        %v739 = vpop.f32.mrb[0].mxu0
        %v740 = vadd.f32 %v296, %v739
        %v741 = vpop.f32.mrb[0].mxu0
        %v742 = vadd.f32 %v292, %v741
        %v743 = vpop.f32.mrb[0].mxu0
        %v744 = vadd.f32 %v296, %v743
        %745 = vmatprep.mubr.bf16.mxu0 0
        %746 = vmatmul.mubr.bf16.gmra.mrb[0].mxu0 %v368
        %v747 = vpop.f32.mrb[0].mxu0
        %v748 = vadd.f32 %v292, %v747
        %v749 = vpop.f32.mrb[0].mxu0
        %v750 = vadd.f32 %v296, %v749
        %v751 = vpop.f32.mrb[0].mxu0
        %v752 = vadd.f32 %v292, %v751
        %v753 = vpop.f32.mrb[0].mxu0
        %v754 = vadd.f32 %v296, %v753
        %755 = vdwg.mxu0
        %v756 = vmax.f32 %v405, 0.0
        %v757 = vmax.f32 %v407, 0.0
        %v758 = vmax.f32 %v598, 0.0
        %v759 = vmax.f32 %v600, 0.0
        %v760 = vmax.f32 %v409, 0.0
        %v761 = vmax.f32 %v411, 0.0
        %v762 = vmax.f32 %v602, 0.0
        %v763 = vmax.f32 %v604, 0.0
        %v764 = vmax.f32 %v415, 0.0
        %v765 = vmax.f32 %v417, 0.0
        %v766 = vmax.f32 %v608, 0.0
        %v767 = vmax.f32 %v610, 0.0
        %v768 = vmax.f32 %v419, 0.0
        %v769 = vmax.f32 %v421, 0.0
        %v770 = vmax.f32 %v612, 0.0
        %v771 = vmax.f32 %v614, 0.0
        %v772 = vmax.f32 %v425, 0.0
        %v773 = vmax.f32 %v427, 0.0
        %v774 = vmax.f32 %v618, 0.0
        %v775 = vmax.f32 %v620, 0.0
        %v776 = vmax.f32 %v429, 0.0
        %v777 = vmax.f32 %v431, 0.0
        %v778 = vmax.f32 %v622, 0.0
        %v779 = vmax.f32 %v624, 0.0
        %v780 = vmax.f32 %v435, 0.0
        %v781 = vmax.f32 %v437, 0.0
        %v782 = vmax.f32 %v628, 0.0
        %v783 = vmax.f32 %v630, 0.0
        %v784 = vmax.f32 %v439, 0.0
        %v785 = vmax.f32 %v441, 0.0
        %v786 = vmax.f32 %v632, 0.0
        %v787 = vmax.f32 %v634, 0.0
        %v788 = vmax.f32 %v445, 0.0
        %v789 = vmax.f32 %v447, 0.0
        %v790 = vmax.f32 %v638, 0.0
        %v791 = vmax.f32 %v640, 0.0
        %v792 = vmax.f32 %v449, 0.0
        %v793 = vmax.f32 %v451, 0.0
        %v794 = vmax.f32 %v642, 0.0
        %v795 = vmax.f32 %v644, 0.0
        %v796 = vmax.f32 %v455, 0.0
        %v797 = vmax.f32 %v457, 0.0
        %v798 = vmax.f32 %v648, 0.0
        %v799 = vmax.f32 %v650, 0.0
        %v800 = vmax.f32 %v459, 0.0
        %v801 = vmax.f32 %v461, 0.0
        %v802 = vmax.f32 %v652, 0.0
        %v803 = vmax.f32 %v654, 0.0
        %v804 = vmax.f32 %v465, 0.0
        %v805 = vmax.f32 %v467, 0.0
        %v806 = vmax.f32 %v658, 0.0
        %v807 = vmax.f32 %v660, 0.0
        %v808 = vmax.f32 %v469, 0.0
        %v809 = vmax.f32 %v471, 0.0
        %v810 = vmax.f32 %v662, 0.0
        %v811 = vmax.f32 %v664, 0.0
        %v812 = vmax.f32 %v475, 0.0
        %v813 = vmax.f32 %v477, 0.0
        %v814 = vmax.f32 %v668, 0.0
        %v815 = vmax.f32 %v670, 0.0
        %v816 = vmax.f32 %v479, 0.0
        %v817 = vmax.f32 %v481, 0.0
        %v818 = vmax.f32 %v672, 0.0
        %v819 = vmax.f32 %v674, 0.0
        %v820 = vmax.f32 %v485, 0.0
        %v821 = vmax.f32 %v487, 0.0
        %v822 = vmax.f32 %v678, 0.0
        %v823 = vmax.f32 %v680, 0.0
        %v824 = vmax.f32 %v489, 0.0
        %v825 = vmax.f32 %v491, 0.0
        %v826 = vmax.f32 %v682, 0.0
        %v827 = vmax.f32 %v684, 0.0
        %v828 = vmax.f32 %v495, 0.0
        %v829 = vmax.f32 %v497, 0.0
        %v830 = vmax.f32 %v688, 0.0
        %v831 = vmax.f32 %v690, 0.0
        %v832 = vmax.f32 %v499, 0.0
        %v833 = vmax.f32 %v501, 0.0
        %v834 = vmax.f32 %v692, 0.0
        %v835 = vmax.f32 %v694, 0.0
        %v836 = vmax.f32 %v505, 0.0
        %v837 = vmax.f32 %v507, 0.0
        %v838 = vmax.f32 %v698, 0.0
        %v839 = vmax.f32 %v700, 0.0
        %v840 = vmax.f32 %v509, 0.0
        %v841 = vmax.f32 %v511, 0.0
        %v842 = vmax.f32 %v702, 0.0
        %v843 = vmax.f32 %v704, 0.0
        %v844 = vmax.f32 %v515, 0.0
        %v845 = vmax.f32 %v517, 0.0
        %v846 = vmax.f32 %v708, 0.0
        %v847 = vmax.f32 %v710, 0.0
        %v848 = vmax.f32 %v519, 0.0
        %v849 = vmax.f32 %v521, 0.0
        %v850 = vmax.f32 %v712, 0.0
        %v851 = vmax.f32 %v714, 0.0
        %v852 = vmax.f32 %v525, 0.0
        %v853 = vmax.f32 %v527, 0.0
        %v854 = vmax.f32 %v718, 0.0
        %v855 = vmax.f32 %v720, 0.0
        %v856 = vmax.f32 %v529, 0.0
        %v857 = vmax.f32 %v531, 0.0
        %v858 = vmax.f32 %v722, 0.0
        %v859 = vmax.f32 %v724, 0.0
        %v860 = vmax.f32 %v535, 0.0
        %v861 = vmax.f32 %v537, 0.0
        %v862 = vmax.f32 %v728, 0.0
        %v863 = vmax.f32 %v730, 0.0
        %v864 = vmax.f32 %v539, 0.0
        %v865 = vmax.f32 %v541, 0.0
        %v866 = vmax.f32 %v732, 0.0
        %v867 = vmax.f32 %v734, 0.0
        %v868 = vmax.f32 %v545, 0.0
        %v869 = vmax.f32 %v547, 0.0
        %v870 = vmax.f32 %v738, 0.0
        %v871 = vmax.f32 %v740, 0.0
        %v872 = vmax.f32 %v549, 0.0
        %v873 = vmax.f32 %v551, 0.0
        %v874 = vmax.f32 %v742, 0.0
        %v875 = vmax.f32 %v744, 0.0
        %v876 = vmax.f32 %v555, 0.0
        %v877 = vmax.f32 %v557, 0.0
        %v878 = vmax.f32 %v748, 0.0
        %v879 = vmax.f32 %v750, 0.0
        %v880 = vmax.f32 %v559, 0.0
        %v881 = vmax.f32 %v561, 0.0
        %v882 = vmax.f32 %v752, 0.0
        %v883 = vmax.f32 %v754, 0.0
        %v884 = vpack.c.bf16 %v760, %v756
        %v885 = vpack.c.bf16 %v761, %v757
        %v886 = vpack.c.bf16 %v762, %v758
        %v887 = vpack.c.bf16 %v763, %v759
        %v888 = vpack.c.bf16 %v768, %v764
        %v889 = vpack.c.bf16 %v769, %v765
        %v890 = vpack.c.bf16 %v770, %v766
        %v891 = vpack.c.bf16 %v771, %v767
        %v892 = vpack.c.bf16 %v776, %v772
        %v893 = vpack.c.bf16 %v777, %v773
        %v894 = vpack.c.bf16 %v778, %v774
        %v895 = vpack.c.bf16 %v779, %v775
        %v896 = vpack.c.bf16 %v784, %v780
        %v897 = vpack.c.bf16 %v785, %v781
        %v898 = vpack.c.bf16 %v786, %v782
        %v899 = vpack.c.bf16 %v787, %v783
        %v900 = vpack.c.bf16 %v792, %v788
        %v901 = vpack.c.bf16 %v793, %v789
        %v902 = vpack.c.bf16 %v794, %v790
        %v903 = vpack.c.bf16 %v795, %v791
        %v904 = vpack.c.bf16 %v800, %v796
        %v905 = vpack.c.bf16 %v801, %v797
        %v906 = vpack.c.bf16 %v802, %v798
        %v907 = vpack.c.bf16 %v803, %v799
        %v908 = vpack.c.bf16 %v808, %v804
        %v909 = vpack.c.bf16 %v809, %v805
        %v910 = vpack.c.bf16 %v810, %v806
        %v911 = vpack.c.bf16 %v811, %v807
        %v912 = vpack.c.bf16 %v816, %v812
        %v913 = vpack.c.bf16 %v817, %v813
        %v914 = vpack.c.bf16 %v818, %v814
        %v915 = vpack.c.bf16 %v819, %v815
        %v916 = vpack.c.bf16 %v824, %v820
        %v917 = vpack.c.bf16 %v825, %v821
        %v918 = vpack.c.bf16 %v826, %v822
        %v919 = vpack.c.bf16 %v827, %v823
        %v920 = vpack.c.bf16 %v832, %v828
        %v921 = vpack.c.bf16 %v833, %v829
        %v922 = vpack.c.bf16 %v834, %v830
        %v923 = vpack.c.bf16 %v835, %v831
        %v924 = vpack.c.bf16 %v840, %v836
        %v925 = vpack.c.bf16 %v841, %v837
        %v926 = vpack.c.bf16 %v842, %v838
        %v927 = vpack.c.bf16 %v843, %v839
        %v928 = vpack.c.bf16 %v848, %v844
        %v929 = vpack.c.bf16 %v849, %v845
        %v930 = vpack.c.bf16 %v850, %v846
        %v931 = vpack.c.bf16 %v851, %v847
        %v932 = vpack.c.bf16 %v856, %v852
        %v933 = vpack.c.bf16 %v857, %v853
        %v934 = vpack.c.bf16 %v858, %v854
        %v935 = vpack.c.bf16 %v859, %v855
        %v936 = vpack.c.bf16 %v864, %v860
        %v937 = vpack.c.bf16 %v865, %v861
        %v938 = vpack.c.bf16 %v866, %v862
        %v939 = vpack.c.bf16 %v867, %v863
        %v940 = vpack.c.bf16 %v872, %v868
        %v941 = vpack.c.bf16 %v873, %v869
        %v942 = vpack.c.bf16 %v874, %v870
        %v943 = vpack.c.bf16 %v875, %v871
        %v944 = vpack.c.bf16 %v880, %v876
        %v945 = vpack.c.bf16 %v881, %v877
        %v946 = vpack.c.bf16 %v882, %v878
        %v947 = vpack.c.bf16 %v883, %v879
        %v948 = vld [vmem:[%s3] sm:$0xf]
        %v949 = vld [vmem:[%s3 + $0x4] sm:$0xf]
        %v950 = vld [vmem:[%s3 + $0x8] sm:$0xf]
        %v951 = vld [vmem:[%s3 + $0xc] sm:$0xf]
        %v952 = vld [vmem:[%s3 + $0x10] sm:$0xf]
        %v953 = vld [vmem:[%s3 + $0x14] sm:$0xf]
        %v954 = vld [vmem:[%s3 + $0x18] sm:$0xf]
        %v955 = vld [vmem:[%s3 + $0x1c] sm:$0xf]
        %v956 = vld [vmem:[%s3 + $0x20] sm:$0xf]
        %v957 = vld [vmem:[%s3 + $0x24] sm:$0xf]
        %v958 = vld [vmem:[%s3 + $0x28] sm:$0xf]
        %v959 = vld [vmem:[%s3 + $0x2c] sm:$0xf]
        %v960 = vld [vmem:[%s3 + $0x30] sm:$0xf]
        %v961 = vld [vmem:[%s3 + $0x34] sm:$0xf]
        %v962 = vld [vmem:[%s3 + $0x38] sm:$0xf]
        %v963 = vld [vmem:[%s3 + $0x3c] sm:$0xf]
        %v964 = vld [vmem:[%s3 + $0x40] sm:$0xf]
        %v965 = vld [vmem:[%s3 + $0x44] sm:$0xf]
        %v966 = vld [vmem:[%s3 + $0x48] sm:$0xf]
        %v967 = vld [vmem:[%s3 + $0x4c] sm:$0xf]
        %v968 = vld [vmem:[%s3 + $0x50] sm:$0xf]
        %v969 = vld [vmem:[%s3 + $0x54] sm:$0xf]
        %v970 = vld [vmem:[%s3 + $0x58] sm:$0xf]
        %v971 = vld [vmem:[%s3 + $0x5c] sm:$0xf]
        %v972 = vld [vmem:[%s3 + $0x60] sm:$0xf]
        %v973 = vld [vmem:[%s3 + $0x64] sm:$0xf]
        %v974 = vld [vmem:[%s3 + $0x68] sm:$0xf]
        %v975 = vld [vmem:[%s3 + $0x6c] sm:$0xf]
        %v976 = vld [vmem:[%s3 + $0x70] sm:$0xf]
        %v977 = vld [vmem:[%s3 + $0x74] sm:$0xf]
        %v978 = vld [vmem:[%s3 + $0x78] sm:$0xf]
        %v979 = vld [vmem:[%s3 + $0x7c] sm:$0xf]
        %v980 = vld [vmem:[%s3 + $0x80] sm:$0xf]
        %v981 = vld [vmem:[%s3 + $0x84] sm:$0xf]
        %v982 = vld [vmem:[%s3 + $0x88] sm:$0xf]
        %v983 = vld [vmem:[%s3 + $0x8c] sm:$0xf]
        %v984 = vld [vmem:[%s3 + $0x90] sm:$0xf]
        %v985 = vld [vmem:[%s3 + $0x94] sm:$0xf]
        %v986 = vld [vmem:[%s3 + $0x98] sm:$0xf]
        %v987 = vld [vmem:[%s3 + $0x9c] sm:$0xf]
        %v988 = vld [vmem:[%s3 + $0xa0] sm:$0xf]
        %v989 = vld [vmem:[%s3 + $0xa4] sm:$0xf]
        %v990 = vld [vmem:[%s3 + $0xa8] sm:$0xf]
        %v991 = vld [vmem:[%s3 + $0xac] sm:$0xf]
        %v992 = vld [vmem:[%s3 + $0xb0] sm:$0xf]
        %v993 = vld [vmem:[%s3 + $0xb4] sm:$0xf]
        %v994 = vld [vmem:[%s3 + $0xb8] sm:$0xf]
        %v995 = vld [vmem:[%s3 + $0xbc] sm:$0xf]
        %v996 = vld [vmem:[%s3 + $0xc0] sm:$0xf]
        %v997 = vld [vmem:[%s3 + $0xc4] sm:$0xf]
        %v998 = vld [vmem:[%s3 + $0xc8] sm:$0xf]
        %v999 = vld [vmem:[%s3 + $0xcc] sm:$0xf]
        %v1000 = vld [vmem:[%s3 + $0xd0] sm:$0xf]
        %v1001 = vld [vmem:[%s3 + $0xd4] sm:$0xf]
        %v1002 = vld [vmem:[%s3 + $0xd8] sm:$0xf]
        %v1003 = vld [vmem:[%s3 + $0xdc] sm:$0xf]
        %v1004 = vld [vmem:[%s3 + $0xe0] sm:$0xf]
        %v1005 = vld [vmem:[%s3 + $0xe4] sm:$0xf]
        %v1006 = vld [vmem:[%s3 + $0xe8] sm:$0xf]
        %v1007 = vld [vmem:[%s3 + $0xec] sm:$0xf]
        %v1008 = vld [vmem:[%s3 + $0xf0] sm:$0xf]
        %v1009 = vld [vmem:[%s3 + $0xf4] sm:$0xf]
        %v1010 = vld [vmem:[%s3 + $0xf8] sm:$0xf]
        %v1011 = vld [vmem:[%s3 + $0xfc] sm:$0xf]
        %v1012 = vld [vmem:[%s4] sm:$0x1]
        %v1014 = vlaneseq
        %v1015 = vshrl.u32 %v1014, 7
        %v1016 = vsub.s32 0, %v1015
        %v1017 = vrot.slane %v1012, %v1016
        %v1083 = vunpack.c.l.b16 %v948
        %v1084 = vunpack.c.l.b16 %v949
        %v1085 = vunpack.c.l.b16 %v950
        %v1086 = vunpack.c.l.b16 %v951
        %v1087 = vunpack.c.l.b16 %v952
        %v1088 = vunpack.c.l.b16 %v953
        %v1089 = vunpack.c.l.b16 %v954
        %v1090 = vunpack.c.l.b16 %v955
        %v1091 = vunpack.c.l.b16 %v956
        %v1092 = vunpack.c.l.b16 %v957
        %v1093 = vunpack.c.l.b16 %v958
        %v1094 = vunpack.c.l.b16 %v959
        %v1095 = vunpack.c.l.b16 %v960
        %v1096 = vunpack.c.l.b16 %v961
        %v1097 = vunpack.c.l.b16 %v962
        %v1098 = vunpack.c.l.b16 %v963
        %v1099 = vunpack.c.l.b16 %v964
        %v1100 = vunpack.c.l.b16 %v965
        %v1101 = vunpack.c.l.b16 %v966
        %v1102 = vunpack.c.l.b16 %v967
        %v1103 = vunpack.c.l.b16 %v968
        %v1104 = vunpack.c.l.b16 %v969
        %v1105 = vunpack.c.l.b16 %v970
        %v1106 = vunpack.c.l.b16 %v971
        %v1107 = vunpack.c.l.b16 %v972
        %v1108 = vunpack.c.l.b16 %v973
        %v1109 = vunpack.c.l.b16 %v974
        %v1110 = vunpack.c.l.b16 %v975
        %v1111 = vunpack.c.l.b16 %v976
        %v1112 = vunpack.c.l.b16 %v977
        %v1113 = vunpack.c.l.b16 %v978
        %v1114 = vunpack.c.l.b16 %v979
        %v1115 = vunpack.c.l.b16 %v980
        %v1116 = vunpack.c.l.b16 %v981
        %v1117 = vunpack.c.l.b16 %v982
        %v1118 = vunpack.c.l.b16 %v983
        %v1119 = vunpack.c.l.b16 %v984
        %v1120 = vunpack.c.l.b16 %v985
        %v1121 = vunpack.c.l.b16 %v986
        %v1122 = vunpack.c.l.b16 %v987
        %v1123 = vunpack.c.l.b16 %v988
        %v1124 = vunpack.c.l.b16 %v989
        %v1125 = vunpack.c.l.b16 %v990
        %v1126 = vunpack.c.l.b16 %v991
        %v1127 = vunpack.c.l.b16 %v992
        %v1128 = vunpack.c.l.b16 %v993
        %v1129 = vunpack.c.l.b16 %v994
        %v1130 = vunpack.c.l.b16 %v995
        %v1131 = vunpack.c.l.b16 %v996
        %v1132 = vunpack.c.l.b16 %v997
        %v1133 = vunpack.c.l.b16 %v998
        %v1134 = vunpack.c.l.b16 %v999
        %v1135 = vunpack.c.l.b16 %v1000
        %v1136 = vunpack.c.l.b16 %v1001
        %v1137 = vunpack.c.l.b16 %v1002
        %v1138 = vunpack.c.l.b16 %v1003
        %v1139 = vunpack.c.l.b16 %v1004
        %v1140 = vunpack.c.l.b16 %v1005
        %v1141 = vunpack.c.l.b16 %v1006
        %v1142 = vunpack.c.l.b16 %v1007
        %v1143 = vunpack.c.l.b16 %v1008
        %v1144 = vunpack.c.l.b16 %v1009
        %v1145 = vunpack.c.l.b16 %v1010
        %v1146 = vunpack.c.l.b16 %v1011
        %v1147 = vpack.c.b16 %v1084, %v1083
        %v1148 = vpack.c.b16 %v1086, %v1085
        %v1149 = vpack.c.b16 %v1088, %v1087
        %v1150 = vpack.c.b16 %v1090, %v1089
        %v1151 = vpack.c.b16 %v1092, %v1091
        %v1152 = vpack.c.b16 %v1094, %v1093
        %v1153 = vpack.c.b16 %v1096, %v1095
        %v1154 = vpack.c.b16 %v1098, %v1097
        %v1155 = vpack.c.b16 %v1100, %v1099
        %v1156 = vpack.c.b16 %v1102, %v1101
        %v1157 = vpack.c.b16 %v1104, %v1103
        %v1158 = vpack.c.b16 %v1106, %v1105
        %v1159 = vpack.c.b16 %v1108, %v1107
        %v1160 = vpack.c.b16 %v1110, %v1109
        %v1161 = vpack.c.b16 %v1112, %v1111
        %v1162 = vpack.c.b16 %v1114, %v1113
        %v1163 = vpack.c.b16 %v1116, %v1115
        %v1164 = vpack.c.b16 %v1118, %v1117
        %v1165 = vpack.c.b16 %v1120, %v1119
        %v1166 = vpack.c.b16 %v1122, %v1121
        %v1167 = vpack.c.b16 %v1124, %v1123
        %v1168 = vpack.c.b16 %v1126, %v1125
        %v1169 = vpack.c.b16 %v1128, %v1127
        %v1170 = vpack.c.b16 %v1130, %v1129
        %v1171 = vpack.c.b16 %v1132, %v1131
        %v1172 = vpack.c.b16 %v1134, %v1133
        %v1173 = vpack.c.b16 %v1136, %v1135
        %v1174 = vpack.c.b16 %v1138, %v1137
        %v1175 = vpack.c.b16 %v1140, %v1139
        %v1176 = vpack.c.b16 %v1142, %v1141
        %v1177 = vpack.c.b16 %v1144, %v1143
        %v1178 = vpack.c.b16 %v1146, %v1145
        %1211 = vmatprep.subr.bf16.mxu0 0
        %1212 = vmatpush1.bf16.msra.mxu0 %v1147
        %1213 = vmatprep.subr.bf16.mxu0 0
        %1214 = vmatpush1.bf16.msra.mxu0 %v1148
        %1215 = vmatprep.subr.bf16.mxu0 0
        %1216 = vmatpush1.bf16.msra.mxu0 %v1149
        %1217 = vmatprep.subr.bf16.mxu0 0
        %1218 = vmatpush1.bf16.msra.mxu0 %v1150
        %1219 = vmatprep.subr.bf16.mxu0 0
        %1220 = vmatpush1.bf16.msra.mxu0 %v1151
        %1221 = vmatprep.subr.bf16.mxu0 0
        %1222 = vmatpush1.bf16.msra.mxu0 %v1152
        %1223 = vmatprep.subr.bf16.mxu0 0
        %1224 = vmatpush1.bf16.msra.mxu0 %v1153
        %1225 = vmatprep.subr.bf16.mxu0 0
        %1226 = vmatpush1.bf16.msra.mxu0 %v1154
        %1227 = vmatprep.subr.bf16.mxu0 0
        %1228 = vmatpush1.bf16.msra.mxu0 %v1155
        %1229 = vmatprep.subr.bf16.mxu0 0
        %1230 = vmatpush1.bf16.msra.mxu0 %v1156
        %1231 = vmatprep.subr.bf16.mxu0 0
        %1232 = vmatpush1.bf16.msra.mxu0 %v1157
        %1233 = vmatprep.subr.bf16.mxu0 0
        %1234 = vmatpush1.bf16.msra.mxu0 %v1158
        %1235 = vmatprep.subr.bf16.mxu0 0
        %1236 = vmatpush1.bf16.msra.mxu0 %v1159
        %1237 = vmatprep.subr.bf16.mxu0 0
        %1238 = vmatpush1.bf16.msra.mxu0 %v1160
        %1239 = vmatprep.subr.bf16.mxu0 0
        %1240 = vmatpush1.bf16.msra.mxu0 %v1161
        %1241 = vmatprep.subr.bf16.mxu0 0
        %1242 = vmatpush1.bf16.msra.mxu0 %v1162
        %1243 = vmatprep.mubr.bf16.mxu0 %v885
        %1244 = vmatmul.mubr.bf16.gmra.mrb[0].mxu0 %v884
        %v1245 = vpop.f32.mrb[0].mxu0
        %v1246 = vadd.f32 %v1017, %v1245
        %v1247 = vpop.f32.mrb[0].mxu0
        %v1248 = vpop.f32.mrb[0].mxu0
        %v1249 = vadd.f32 %v1017, %v1248
        %v1250 = vpop.f32.mrb[0].mxu0
        %1251 = vmatprep.mubr.bf16.mxu0 %v889
        %1252 = vmatmul.mubr.bf16.gmra.mrb[0].mxu0 %v888
        %v1253 = vpop.f32.mrb[0].mxu0
        %v1254 = vadd.f32 %v1017, %v1253
        %v1255 = vpop.f32.mrb[0].mxu0
        %v1256 = vpop.f32.mrb[0].mxu0
        %v1257 = vadd.f32 %v1017, %v1256
        %v1258 = vpop.f32.mrb[0].mxu0
        %1259 = vmatprep.mubr.bf16.mxu0 %v893
        %1260 = vmatmul.mubr.bf16.gmra.mrb[0].mxu0 %v892
        %v1261 = vpop.f32.mrb[0].mxu0
        %v1262 = vadd.f32 %v1017, %v1261
        %v1263 = vpop.f32.mrb[0].mxu0
        %v1264 = vpop.f32.mrb[0].mxu0
        %v1265 = vadd.f32 %v1017, %v1264
        %v1266 = vpop.f32.mrb[0].mxu0
        %1267 = vmatprep.mubr.bf16.mxu0 %v897
        %1268 = vmatmul.mubr.bf16.gmra.mrb[0].mxu0 %v896
        %v1269 = vpop.f32.mrb[0].mxu0
        %v1270 = vadd.f32 %v1017, %v1269
        %v1271 = vpop.f32.mrb[0].mxu0
        %v1272 = vpop.f32.mrb[0].mxu0
        %v1273 = vadd.f32 %v1017, %v1272
        %v1274 = vpop.f32.mrb[0].mxu0
        %1275 = vmatprep.mubr.bf16.mxu0 %v901
        %1276 = vmatmul.mubr.bf16.gmra.mrb[0].mxu0 %v900
        %v1277 = vpop.f32.mrb[0].mxu0
        %v1278 = vadd.f32 %v1017, %v1277
        %v1279 = vpop.f32.mrb[0].mxu0
        %v1280 = vpop.f32.mrb[0].mxu0
        %v1281 = vadd.f32 %v1017, %v1280
        %v1282 = vpop.f32.mrb[0].mxu0
        %1283 = vmatprep.mubr.bf16.mxu0 %v905
        %1284 = vmatmul.mubr.bf16.gmra.mrb[0].mxu0 %v904
        %v1285 = vpop.f32.mrb[0].mxu0
        %v1286 = vadd.f32 %v1017, %v1285
        %v1287 = vpop.f32.mrb[0].mxu0
        %v1288 = vpop.f32.mrb[0].mxu0
        %v1289 = vadd.f32 %v1017, %v1288
        %v1290 = vpop.f32.mrb[0].mxu0
        %1291 = vmatprep.mubr.bf16.mxu0 %v909
        %1292 = vmatmul.mubr.bf16.gmra.mrb[0].mxu0 %v908
        %v1293 = vpop.f32.mrb[0].mxu0
        %v1294 = vadd.f32 %v1017, %v1293
        %v1295 = vpop.f32.mrb[0].mxu0
        %v1296 = vpop.f32.mrb[0].mxu0
        %v1297 = vadd.f32 %v1017, %v1296
        %v1298 = vpop.f32.mrb[0].mxu0
        %1299 = vmatprep.mubr.bf16.mxu0 %v913
        %1300 = vmatmul.mubr.bf16.gmra.mrb[0].mxu0 %v912
        %v1301 = vpop.f32.mrb[0].mxu0
        %v1302 = vadd.f32 %v1017, %v1301
        %v1303 = vpop.f32.mrb[0].mxu0
        %v1304 = vpop.f32.mrb[0].mxu0
        %v1305 = vadd.f32 %v1017, %v1304
        %v1306 = vpop.f32.mrb[0].mxu0
        %1307 = vmatprep.mubr.bf16.mxu0 %v917
        %1308 = vmatmul.mubr.bf16.gmra.mrb[0].mxu0 %v916
        %v1309 = vpop.f32.mrb[0].mxu0
        %v1310 = vadd.f32 %v1017, %v1309
        %v1311 = vpop.f32.mrb[0].mxu0
        %v1312 = vpop.f32.mrb[0].mxu0
        %v1313 = vadd.f32 %v1017, %v1312
        %v1314 = vpop.f32.mrb[0].mxu0
        %1315 = vmatprep.mubr.bf16.mxu0 %v921
        %1316 = vmatmul.mubr.bf16.gmra.mrb[0].mxu0 %v920
        %v1317 = vpop.f32.mrb[0].mxu0
        %v1318 = vadd.f32 %v1017, %v1317
        %v1319 = vpop.f32.mrb[0].mxu0
        %v1320 = vpop.f32.mrb[0].mxu0
        %v1321 = vadd.f32 %v1017, %v1320
        %v1322 = vpop.f32.mrb[0].mxu0
        %1323 = vmatprep.mubr.bf16.mxu0 %v925
        %1324 = vmatmul.mubr.bf16.gmra.mrb[0].mxu0 %v924
        %v1325 = vpop.f32.mrb[0].mxu0
        %v1326 = vadd.f32 %v1017, %v1325
        %v1327 = vpop.f32.mrb[0].mxu0
        %v1328 = vpop.f32.mrb[0].mxu0
        %v1329 = vadd.f32 %v1017, %v1328
        %v1330 = vpop.f32.mrb[0].mxu0
        %1331 = vmatprep.mubr.bf16.mxu0 %v929
        %1332 = vmatmul.mubr.bf16.gmra.mrb[0].mxu0 %v928
        %v1333 = vpop.f32.mrb[0].mxu0
        %v1334 = vadd.f32 %v1017, %v1333
        %v1335 = vpop.f32.mrb[0].mxu0
        %v1336 = vpop.f32.mrb[0].mxu0
        %v1337 = vadd.f32 %v1017, %v1336
        %v1338 = vpop.f32.mrb[0].mxu0
        %1339 = vmatprep.mubr.bf16.mxu0 %v933
        %1340 = vmatmul.mubr.bf16.gmra.mrb[0].mxu0 %v932
        %v1341 = vpop.f32.mrb[0].mxu0
        %v1342 = vadd.f32 %v1017, %v1341
        %v1343 = vpop.f32.mrb[0].mxu0
        %v1344 = vpop.f32.mrb[0].mxu0
        %v1345 = vadd.f32 %v1017, %v1344
        %v1346 = vpop.f32.mrb[0].mxu0
        %1347 = vmatprep.mubr.bf16.mxu0 %v937
        %1348 = vmatmul.mubr.bf16.gmra.mrb[0].mxu0 %v936
        %v1349 = vpop.f32.mrb[0].mxu0
        %v1350 = vadd.f32 %v1017, %v1349
        %v1351 = vpop.f32.mrb[0].mxu0
        %v1352 = vpop.f32.mrb[0].mxu0
        %v1353 = vadd.f32 %v1017, %v1352
        %v1354 = vpop.f32.mrb[0].mxu0
        %1355 = vmatprep.mubr.bf16.mxu0 %v941
        %1356 = vmatmul.mubr.bf16.gmra.mrb[0].mxu0 %v940
        %v1357 = vpop.f32.mrb[0].mxu0
        %v1358 = vadd.f32 %v1017, %v1357
        %v1359 = vpop.f32.mrb[0].mxu0
        %v1360 = vpop.f32.mrb[0].mxu0
        %v1361 = vadd.f32 %v1017, %v1360
        %v1362 = vpop.f32.mrb[0].mxu0
        %1363 = vmatprep.mubr.bf16.mxu0 %v945
        %1364 = vmatmul.mubr.bf16.gmra.mrb[0].mxu0 %v944
        %v1365 = vpop.f32.mrb[0].mxu0
        %v1366 = vadd.f32 %v1017, %v1365
        %v1367 = vpop.f32.mrb[0].mxu0
        %v1368 = vpop.f32.mrb[0].mxu0
        %v1369 = vadd.f32 %v1017, %v1368
        %v1370 = vpop.f32.mrb[0].mxu0
        %1371 = vdwg.mxu0
        %1372 = vmatprep.subr.bf16.mxu0 0
        %1373 = vmatpush1.bf16.msra.mxu0 %v1163
        %1374 = vmatprep.subr.bf16.mxu0 0
        %1375 = vmatpush1.bf16.msra.mxu0 %v1164
        %1376 = vmatprep.subr.bf16.mxu0 0
        %1377 = vmatpush1.bf16.msra.mxu0 %v1165
        %1378 = vmatprep.subr.bf16.mxu0 0
        %1379 = vmatpush1.bf16.msra.mxu0 %v1166
        %1380 = vmatprep.subr.bf16.mxu0 0
        %1381 = vmatpush1.bf16.msra.mxu0 %v1167
        %1382 = vmatprep.subr.bf16.mxu0 0
        %1383 = vmatpush1.bf16.msra.mxu0 %v1168
        %1384 = vmatprep.subr.bf16.mxu0 0
        %1385 = vmatpush1.bf16.msra.mxu0 %v1169
        %1386 = vmatprep.subr.bf16.mxu0 0
        %1387 = vmatpush1.bf16.msra.mxu0 %v1170
        %1388 = vmatprep.subr.bf16.mxu0 0
        %1389 = vmatpush1.bf16.msra.mxu0 %v1171
        %1390 = vmatprep.subr.bf16.mxu0 0
        %1391 = vmatpush1.bf16.msra.mxu0 %v1172
        %1392 = vmatprep.subr.bf16.mxu0 0
        %1393 = vmatpush1.bf16.msra.mxu0 %v1173
        %1394 = vmatprep.subr.bf16.mxu0 0
        %1395 = vmatpush1.bf16.msra.mxu0 %v1174
        %1396 = vmatprep.subr.bf16.mxu0 0
        %1397 = vmatpush1.bf16.msra.mxu0 %v1175
        %1398 = vmatprep.subr.bf16.mxu0 0
        %1399 = vmatpush1.bf16.msra.mxu0 %v1176
        %1400 = vmatprep.subr.bf16.mxu0 0
        %1401 = vmatpush1.bf16.msra.mxu0 %v1177
        %1402 = vmatprep.subr.bf16.mxu0 0
        %1403 = vmatpush1.bf16.msra.mxu0 %v1178
        %1404 = vmatprep.mubr.bf16.mxu0 %v887
        %1405 = vmatmul.mubr.bf16.gmra.mrb[0].mxu0 %v886
        %v1406 = vpop.f32.mrb[0].mxu0
        %v1407 = vadd.f32 %v1246, %v1406
        %v1408 = vpop.f32.mrb[0].mxu0
        %v1409 = vpop.f32.mrb[0].mxu0
        %v1410 = vadd.f32 %v1249, %v1409
        %v1411 = vpop.f32.mrb[0].mxu0
        %1412 = vmatprep.mubr.bf16.mxu0 %v891
        %1413 = vmatmul.mubr.bf16.gmra.mrb[0].mxu0 %v890
        %v1414 = vpop.f32.mrb[0].mxu0
        %v1415 = vadd.f32 %v1254, %v1414
        %v1416 = vpop.f32.mrb[0].mxu0
        %v1417 = vpop.f32.mrb[0].mxu0
        %v1418 = vadd.f32 %v1257, %v1417
        %v1419 = vpop.f32.mrb[0].mxu0
        %1420 = vmatprep.mubr.bf16.mxu0 %v895
        %1421 = vmatmul.mubr.bf16.gmra.mrb[0].mxu0 %v894
        %v1422 = vpop.f32.mrb[0].mxu0
        %v1423 = vadd.f32 %v1262, %v1422
        %v1424 = vpop.f32.mrb[0].mxu0
        %v1425 = vpop.f32.mrb[0].mxu0
        %v1426 = vadd.f32 %v1265, %v1425
        %v1427 = vpop.f32.mrb[0].mxu0
        %1428 = vmatprep.mubr.bf16.mxu0 %v899
        %1429 = vmatmul.mubr.bf16.gmra.mrb[0].mxu0 %v898
        %v1430 = vpop.f32.mrb[0].mxu0
        %v1431 = vadd.f32 %v1270, %v1430
        %v1432 = vpop.f32.mrb[0].mxu0
        %v1433 = vpop.f32.mrb[0].mxu0
        %v1434 = vadd.f32 %v1273, %v1433
        %v1435 = vpop.f32.mrb[0].mxu0
        %1436 = vmatprep.mubr.bf16.mxu0 %v903
        %1437 = vmatmul.mubr.bf16.gmra.mrb[0].mxu0 %v902
        %v1438 = vpop.f32.mrb[0].mxu0
        %v1439 = vadd.f32 %v1278, %v1438
        %v1440 = vpop.f32.mrb[0].mxu0
        %v1441 = vpop.f32.mrb[0].mxu0
        %v1442 = vadd.f32 %v1281, %v1441
        %v1443 = vpop.f32.mrb[0].mxu0
        %1444 = vmatprep.mubr.bf16.mxu0 %v907
        %1445 = vmatmul.mubr.bf16.gmra.mrb[0].mxu0 %v906
        %v1446 = vpop.f32.mrb[0].mxu0
        %v1447 = vadd.f32 %v1286, %v1446
        %v1448 = vpop.f32.mrb[0].mxu0
        %v1449 = vpop.f32.mrb[0].mxu0
        %v1450 = vadd.f32 %v1289, %v1449
        %v1451 = vpop.f32.mrb[0].mxu0
        %1452 = vmatprep.mubr.bf16.mxu0 %v911
        %1453 = vmatmul.mubr.bf16.gmra.mrb[0].mxu0 %v910
        %v1454 = vpop.f32.mrb[0].mxu0
        %v1455 = vadd.f32 %v1294, %v1454
        %v1456 = vpop.f32.mrb[0].mxu0
        %v1457 = vpop.f32.mrb[0].mxu0
        %v1458 = vadd.f32 %v1297, %v1457
        %v1459 = vpop.f32.mrb[0].mxu0
        %1460 = vmatprep.mubr.bf16.mxu0 %v915
        %1461 = vmatmul.mubr.bf16.gmra.mrb[0].mxu0 %v914
        %v1462 = vpop.f32.mrb[0].mxu0
        %v1463 = vadd.f32 %v1302, %v1462
        %v1464 = vpop.f32.mrb[0].mxu0
        %v1465 = vpop.f32.mrb[0].mxu0
        %v1466 = vadd.f32 %v1305, %v1465
        %v1467 = vpop.f32.mrb[0].mxu0
        %1468 = vmatprep.mubr.bf16.mxu0 %v919
        %1469 = vmatmul.mubr.bf16.gmra.mrb[0].mxu0 %v918
        %v1470 = vpop.f32.mrb[0].mxu0
        %v1471 = vadd.f32 %v1310, %v1470
        %v1472 = vpop.f32.mrb[0].mxu0
        %v1473 = vpop.f32.mrb[0].mxu0
        %v1474 = vadd.f32 %v1313, %v1473
        %v1475 = vpop.f32.mrb[0].mxu0
        %1476 = vmatprep.mubr.bf16.mxu0 %v923
        %1477 = vmatmul.mubr.bf16.gmra.mrb[0].mxu0 %v922
        %v1478 = vpop.f32.mrb[0].mxu0
        %v1479 = vadd.f32 %v1318, %v1478
        %v1480 = vpop.f32.mrb[0].mxu0
        %v1481 = vpop.f32.mrb[0].mxu0
        %v1482 = vadd.f32 %v1321, %v1481
        %v1483 = vpop.f32.mrb[0].mxu0
        %1484 = vmatprep.mubr.bf16.mxu0 %v927
        %1485 = vmatmul.mubr.bf16.gmra.mrb[0].mxu0 %v926
        %v1486 = vpop.f32.mrb[0].mxu0
        %v1487 = vadd.f32 %v1326, %v1486
        %v1488 = vpop.f32.mrb[0].mxu0
        %v1489 = vpop.f32.mrb[0].mxu0
        %v1490 = vadd.f32 %v1329, %v1489
        %v1491 = vpop.f32.mrb[0].mxu0
        %1492 = vmatprep.mubr.bf16.mxu0 %v931
        %1493 = vmatmul.mubr.bf16.gmra.mrb[0].mxu0 %v930
        %v1494 = vpop.f32.mrb[0].mxu0
        %v1495 = vadd.f32 %v1334, %v1494
        %v1496 = vpop.f32.mrb[0].mxu0
        %v1497 = vpop.f32.mrb[0].mxu0
        %v1498 = vadd.f32 %v1337, %v1497
        %v1499 = vpop.f32.mrb[0].mxu0
        %1500 = vmatprep.mubr.bf16.mxu0 %v935
        %1501 = vmatmul.mubr.bf16.gmra.mrb[0].mxu0 %v934
        %v1502 = vpop.f32.mrb[0].mxu0
        %v1503 = vadd.f32 %v1342, %v1502
        %v1504 = vpop.f32.mrb[0].mxu0
        %v1505 = vpop.f32.mrb[0].mxu0
        %v1506 = vadd.f32 %v1345, %v1505
        %v1507 = vpop.f32.mrb[0].mxu0
        %1508 = vmatprep.mubr.bf16.mxu0 %v939
        %1509 = vmatmul.mubr.bf16.gmra.mrb[0].mxu0 %v938
        %v1510 = vpop.f32.mrb[0].mxu0
        %v1511 = vadd.f32 %v1350, %v1510
        %v1512 = vpop.f32.mrb[0].mxu0
        %v1513 = vpop.f32.mrb[0].mxu0
        %v1514 = vadd.f32 %v1353, %v1513
        %v1515 = vpop.f32.mrb[0].mxu0
        %1516 = vmatprep.mubr.bf16.mxu0 %v943
        %1517 = vmatmul.mubr.bf16.gmra.mrb[0].mxu0 %v942
        %v1518 = vpop.f32.mrb[0].mxu0
        %v1519 = vadd.f32 %v1358, %v1518
        %v1520 = vpop.f32.mrb[0].mxu0
        %v1521 = vpop.f32.mrb[0].mxu0
        %v1522 = vadd.f32 %v1361, %v1521
        %v1523 = vpop.f32.mrb[0].mxu0
        %1524 = vmatprep.mubr.bf16.mxu0 %v947
        %1525 = vmatmul.mubr.bf16.gmra.mrb[0].mxu0 %v946
        %v1526 = vpop.f32.mrb[0].mxu0
        %v1527 = vadd.f32 %v1366, %v1526
        %v1528 = vpop.f32.mrb[0].mxu0
        %v1529 = vpop.f32.mrb[0].mxu0
        %v1530 = vadd.f32 %v1369, %v1529
        %v1531 = vpop.f32.mrb[0].mxu0
        %1532 = vdwg.mxu0
        %v1533 = vtanh.pop %v1407
        %v1534 = vtanh.pop %v1410
        %v1535 = vtanh.pop %v1415
        %v1536 = vtanh.pop %v1418
        %v1537 = vtanh.pop %v1423
        %v1538 = vtanh.pop %v1426
        %v1539 = vtanh.pop %v1431
        %v1540 = vtanh.pop %v1434
        %v1541 = vtanh.pop %v1439
        %v1542 = vtanh.pop %v1442
        %v1543 = vtanh.pop %v1447
        %v1544 = vtanh.pop %v1450
        %v1545 = vtanh.pop %v1455
        %v1546 = vtanh.pop %v1458
        %v1547 = vtanh.pop %v1463
        %v1548 = vtanh.pop %v1466
        %v1549 = vtanh.pop %v1471
        %v1550 = vtanh.pop %v1474
        %v1551 = vtanh.pop %v1479
        %v1552 = vtanh.pop %v1482
        %v1553 = vtanh.pop %v1487
        %v1554 = vtanh.pop %v1490
        %v1555 = vtanh.pop %v1495
        %v1556 = vtanh.pop %v1498
        %v1557 = vtanh.pop %v1503
        %v1558 = vtanh.pop %v1506
        %v1559 = vtanh.pop %v1511
        %v1560 = vtanh.pop %v1514
        %v1561 = vtanh.pop %v1519
        %v1562 = vtanh.pop %v1522
        %v1563 = vtanh.pop %v1527
        %v1564 = vtanh.pop %v1530
        %v1565 = vpack.c.bf16 %v1534, %v1533
        %v1566 = vpack.c.bf16 %v1536, %v1535
        %v1567 = vpack.c.bf16 %v1538, %v1537
        %v1568 = vpack.c.bf16 %v1540, %v1539
        %v1569 = vpack.c.bf16 %v1542, %v1541
        %v1570 = vpack.c.bf16 %v1544, %v1543
        %v1571 = vpack.c.bf16 %v1546, %v1545
        %v1572 = vpack.c.bf16 %v1548, %v1547
        %v1573 = vpack.c.bf16 %v1550, %v1549
        %v1574 = vpack.c.bf16 %v1552, %v1551
        %v1575 = vpack.c.bf16 %v1554, %v1553
        %v1576 = vpack.c.bf16 %v1556, %v1555
        %v1577 = vpack.c.bf16 %v1558, %v1557
        %v1578 = vpack.c.bf16 %v1560, %v1559
        %v1579 = vpack.c.bf16 %v1562, %v1561
        %v1580 = vpack.c.bf16 %v1564, %v1563
        %v1597 = vunpack.c.l.b16 %v1565
        %v1598 = vunpack.c.h.b16 %v1565
        %v1599 = vunpack.c.l.b16 %v1566
        %v1600 = vunpack.c.h.b16 %v1566
        %v1601 = vunpack.c.l.b16 %v1567
        %v1602 = vunpack.c.h.b16 %v1567
        %v1603 = vunpack.c.l.b16 %v1568
        %v1604 = vunpack.c.h.b16 %v1568
        %v1605 = vunpack.c.l.b16 %v1569
        %v1606 = vunpack.c.h.b16 %v1569
        %v1607 = vunpack.c.l.b16 %v1570
        %v1608 = vunpack.c.h.b16 %v1570
        %v1609 = vunpack.c.l.b16 %v1571
        %v1610 = vunpack.c.h.b16 %v1571
        %v1611 = vunpack.c.l.b16 %v1572
        %v1612 = vunpack.c.h.b16 %v1572
        %v1613 = vunpack.c.l.b16 %v1573
        %v1614 = vunpack.c.h.b16 %v1573
        %v1615 = vunpack.c.l.b16 %v1574
        %v1616 = vunpack.c.h.b16 %v1574
        %v1617 = vunpack.c.l.b16 %v1575
        %v1618 = vunpack.c.h.b16 %v1575
        %v1619 = vunpack.c.l.b16 %v1576
        %v1620 = vunpack.c.h.b16 %v1576
        %v1621 = vunpack.c.l.b16 %v1577
        %v1622 = vunpack.c.h.b16 %v1577
        %v1623 = vunpack.c.l.b16 %v1578
        %v1624 = vunpack.c.h.b16 %v1578
        %v1625 = vunpack.c.l.b16 %v1579
        %v1626 = vunpack.c.h.b16 %v1579
        %v1627 = vunpack.c.l.b16 %v1580
        %v1628 = vunpack.c.h.b16 %v1580
        %v1629 = vpack.c.b16 %v1597, %v1597
        %v1630 = vpack.c.b16 %v1598, %v1598
        %v1631 = vpack.c.b16 %v1599, %v1599
        %v1632 = vpack.c.b16 %v1600, %v1600
        %v1633 = vpack.c.b16 %v1601, %v1601
        %v1634 = vpack.c.b16 %v1602, %v1602
        %v1635 = vpack.c.b16 %v1603, %v1603
        %v1636 = vpack.c.b16 %v1604, %v1604
        %v1637 = vpack.c.b16 %v1605, %v1605
        %v1638 = vpack.c.b16 %v1606, %v1606
        %v1639 = vpack.c.b16 %v1607, %v1607
        %v1640 = vpack.c.b16 %v1608, %v1608
        %v1641 = vpack.c.b16 %v1609, %v1609
        %v1642 = vpack.c.b16 %v1610, %v1610
        %v1643 = vpack.c.b16 %v1611, %v1611
        %v1644 = vpack.c.b16 %v1612, %v1612
        %v1645 = vpack.c.b16 %v1613, %v1613
        %v1646 = vpack.c.b16 %v1614, %v1614
        %v1647 = vpack.c.b16 %v1615, %v1615
        %v1648 = vpack.c.b16 %v1616, %v1616
        %v1649 = vpack.c.b16 %v1617, %v1617
        %v1650 = vpack.c.b16 %v1618, %v1618
        %v1651 = vpack.c.b16 %v1619, %v1619
        %v1652 = vpack.c.b16 %v1620, %v1620
        %v1653 = vpack.c.b16 %v1621, %v1621
        %v1654 = vpack.c.b16 %v1622, %v1622
        %v1655 = vpack.c.b16 %v1623, %v1623
        %v1656 = vpack.c.b16 %v1624, %v1624
        %v1657 = vpack.c.b16 %v1625, %v1625
        %v1658 = vpack.c.b16 %v1626, %v1626
        %v1659 = vpack.c.b16 %v1627, %v1627
        %v1660 = vpack.c.b16 %v1628, %v1628
        %1693 = vst [vmem:[%s218] sm:$0xf] %v1629
        %1694 = vst [vmem:[%s218 + $0x4] sm:$0xf] %v1630
        %1695 = vst [vmem:[%s218 + $0x8] sm:$0xf] %v1631
        %1696 = vst [vmem:[%s218 + $0xc] sm:$0xf] %v1632
        %1697 = vst [vmem:[%s218 + $0x10] sm:$0xf] %v1633
        %1698 = vst [vmem:[%s218 + $0x14] sm:$0xf] %v1634
        %1699 = vst [vmem:[%s218 + $0x18] sm:$0xf] %v1635
        %1700 = vst [vmem:[%s218 + $0x1c] sm:$0xf] %v1636
        %1701 = vst [vmem:[%s218 + $0x20] sm:$0xf] %v1637
        %1702 = vst [vmem:[%s218 + $0x24] sm:$0xf] %v1638
        %1703 = vst [vmem:[%s218 + $0x28] sm:$0xf] %v1639
        %1704 = vst [vmem:[%s218 + $0x2c] sm:$0xf] %v1640
        %1705 = vst [vmem:[%s218 + $0x30] sm:$0xf] %v1641
        %1706 = vst [vmem:[%s218 + $0x34] sm:$0xf] %v1642
        %1707 = vst [vmem:[%s218 + $0x38] sm:$0xf] %v1643
        %1708 = vst [vmem:[%s218 + $0x3c] sm:$0xf] %v1644
        %1709 = vst [vmem:[%s218 + $0x40] sm:$0xf] %v1645
        %1710 = vst [vmem:[%s218 + $0x44] sm:$0xf] %v1646
        %1711 = vst [vmem:[%s218 + $0x48] sm:$0xf] %v1647
        %1712 = vst [vmem:[%s218 + $0x4c] sm:$0xf] %v1648
        %1713 = vst [vmem:[%s218 + $0x50] sm:$0xf] %v1649
        %1714 = vst [vmem:[%s218 + $0x54] sm:$0xf] %v1650
        %1715 = vst [vmem:[%s218 + $0x58] sm:$0xf] %v1651
        %1716 = vst [vmem:[%s218 + $0x5c] sm:$0xf] %v1652
        %1717 = vst [vmem:[%s218 + $0x60] sm:$0xf] %v1653
        %1718 = vst [vmem:[%s218 + $0x64] sm:$0xf] %v1654
        %1719 = vst [vmem:[%s218 + $0x68] sm:$0xf] %v1655
        %1720 = vst [vmem:[%s218 + $0x6c] sm:$0xf] %v1656
        %1721 = vst [vmem:[%s218 + $0x70] sm:$0xf] %v1657
        %1722 = vst [vmem:[%s218 + $0x74] sm:$0xf] %v1658
        %1723 = vst [vmem:[%s218 + $0x78] sm:$0xf] %v1659
        %1724 = vst [vmem:[%s218 + $0x7c] sm:$0xf] %v1660
        %s1725 = sand.u32 %s137, 1
        %s1726 = scalar_lea.sflag [#allocation3], %s1725
        %s1727 = sand.u32 %s137, 1
        %s1728 = smul.addr %s1727, 128
        %s1729 = scalar_lea.vmem [#allocation2], %s1728
        // Predicated region
        $region41: #{_actor_forward_padded.1} parent=39 // pred_check
          %p1730 = pneg %p147
        $region42: #{_actor_forward_padded.1} parent=39 // pred_check_branch
          %1732 = sbr.rel (%p1730) target = $region44
        $region43: #{_actor_forward_padded.1} parent=39 // pred_region
          %s1733 = smul.u32 32, %s19
          %s1735 = ssub.s32 2048, 2048
          %1736 = vsyncadd %s1726, %s1735
          %s1737 = smul.addr %s1733, 64
          %s1738 = scalar_lea.hbm %s5, %s1737
          %s1739 = sshll.u32 %s1729, 4
          %s1740 = int_to_ptr.vmem [resolvable:$true] %s1739
          %1745 = dma.vmem_to_hbm [thread:$0]  %s1740, 2048, %s1738, %s1726, 64, 64, 4
        $region44: #{_actor_forward_padded.1} parent=39 // pred_fallthru
          _
      $region40: #{_actor_forward_padded.1} parent=5 // pred_fallthru
        _
      %p1746 = scmp.le.s32.totalorder 2, %s14
      // Predicated region
      $region45: #{_actor_forward_padded.1} parent=5 // pred_check
        %p1747 = pneg %p1746
      $region46: #{_actor_forward_padded.1} parent=5 // pred_check_branch
        %1749 = sbr.rel (%p1747) target = $region48
      $region47: #{_actor_forward_padded.1} parent=5 // pred_region
        %s1750 = ssub.s32 %s14, 2
        // Predicated region
        $region49: #{_actor_forward_padded.1} parent=47 // pred_check
          %p1751 = pneg %p153
        $region50: #{_actor_forward_padded.1} parent=47 // pred_check_branch
          %1753 = sbr.rel (%p1751) target = $region52
        $region51: #{_actor_forward_padded.1} parent=47 // pred_region
          %s1754 = sand.u32 %s138, 1
          %s1755 = scalar_lea.sflag [#allocation3], %s1754
          %s1756 = sand.u32 %s138, 1
          %s1757 = smul.addr %s1756, 128
          %s1758 = scalar_lea.vmem [#allocation2], %s1757
          %1759 = dma.done %s1755, 2048
        $region52: #{_actor_forward_padded.1} parent=47 // pred_fallthru
          _
      $region48: #{_actor_forward_padded.1} parent=5 // pred_fallthru
        _
    $region6: #{_actor_forward_padded.1} parent=1 // loop_footer
      %s18 = sadd.s32 1, %s14
    $region7: #{_actor_forward_padded.1} parent=1 // loop_footer_branch
      %13 = sbr.rel target = $region3
    $region8: #{_actor_forward_padded.1} parent=1 // loop_exit
      _
    %1760 = vsyncpa [#allocation3], 1
    %s1761 = scalar_lea.sflag [#allocation3], 1
    %1762 = vsyncpa %s1761, 1

</llo_original>
